<compile_context>
chip_gen: v6e
topology: v6e:2x2x1
jax: 0.10.0
libtpu: 0.0.40
codegen_flags: <defaults>
</compile_context>

<pallas_src>
import functools

import jax
import jax.numpy as jnp
import numpy as np
from jax.experimental import pallas as pl
from jax.experimental.pallas import tpu as pltpu


def _round_up(x, m):
    return ((x + m - 1) // m) * m


# -----------------------------------------------------------------------------
# Feature probe: single-buffer loop-invariant operands via
# pipeline_mode=pl.Buffered(1).  Probed once at import time (eagerly, outside
# any trace) so an unsupported API degrades to default double-buffering
# instead of failing the real kernel.
# -----------------------------------------------------------------------------
def _probe_single_buffer():
    try:
        w_spec = pl.BlockSpec((8, 128), lambda i: (0, 0),
                              pipeline_mode=pl.Buffered(1))

        def _k(w_ref, o_ref):
            o_ref[...] = w_ref[...] * 2.0

        f = pl.pallas_call(
            _k,
            out_shape=jax.ShapeDtypeStruct((16, 128), jnp.float32),
            grid=(2,),
            in_specs=[w_spec],
            out_specs=pl.BlockSpec((8, 128), lambda i: (i, 0)),
        )
        jax.block_until_ready(f(jnp.zeros((8, 128), jnp.float32)))
        return True
    except Exception:
        return False


_SINGLE_BUFFER_WEIGHTS = _probe_single_buffer()


def _weight_spec(block_shape, index_map):
    """BlockSpec for a loop-invariant operand (constant index_map)."""
    if _SINGLE_BUFFER_WEIGHTS:
        return pl.BlockSpec(block_shape, index_map,
                            pipeline_mode=pl.Buffered(1))
    return pl.BlockSpec(block_shape, index_map)


def _pick_time_block(T, Bb, Hp, mx_itemsize, requested, budget_bytes):
    """Largest Tb (<= requested) whose working set fits the VMEM budget."""
    # single-buffered weights + n-gate bias + f32 carry scratch
    fixed = Hp * 3 * Hp * mx_itemsize + Hp * 4 + Bb * Hp * 4
    # double-buffered gi input block + double-buffered f32 hs output block
    per_t = 2 * Bb * 3 * Hp * mx_itemsize + 2 * Bb * Hp * 4
    tb = max(1, min(int(requested), int(T), (budget_bytes - fixed) // per_t))
    if tb > 8:
        tb = (tb // 8) * 8
    return int(tb)


def _gru_kernel(gi_ref, wh_ref, bhn_ref, hs_ref, h_state, *, unroll):
    """One grid step == (one batch block) x (one block of Tb timesteps).

    gi_ref : (Tb, Bb, 3*Hp) precomputed input projections (+ folded biases),
                            time-major (bf16 or f32)
    wh_ref : (Hp, 3*Hp)     fused hidden->hidden weights, gate order (r, z, n)
    bhn_ref: (1, Hp)        hidden bias of the n gate (stays inside r * (...))
    hs_ref : (Tb, Bb, Hp)   per-step hidden outputs, time-major (dense stores)
    h_state: (Bb, Hp)       VMEM scratch carrying h_{t-1} across time blocks
    """
    Bb, Hp = h_state.shape
    Tb = gi_ref.shape[0]

    # Time axis is innermost -> a new batch block starts at time-block 0.
    @pl.when(pl.program_id(1) == 0)
    def _():
        h_state[...] = jnp.zeros_like(h_state)

    # Loop-invariant operands: load / broadcast ONCE (JAX does not CSE
    # broadcast_in_dim; hoisting keeps it off the serial critical path).
    wh = wh_ref[...]                                                # (Hp, 3Hp)
    bhn = jnp.broadcast_to(bhn_ref[...].astype(jnp.float32), (Bb, Hp))

    def step(t, h):
        gi = gi_ref[t].astype(jnp.float32)                          # (Bb, 3Hp)
        gh = jnp.dot(h.astype(wh.dtype), wh,
                     preferred_element_type=jnp.float32)            # (Bb, 3Hp)
        # Single EUP push over the fused r||z lanes instead of two small ones.
        rz = jax.nn.sigmoid(gi[:, :2 * Hp] + gh[:, :2 * Hp])
        r = rz[:, :Hp]
        z = rz[:, Hp:]
        n = jnp.tanh(gi[:, 2 * Hp:] + r * (gh[:, 2 * Hp:] + bhn))
        h_new = (1.0 - z) * n + z * h
        hs_ref[t] = h_new.astype(hs_ref.dtype)    # dense (Bb, Hp) slab store
        return h_new

    if Tb <= 8:
        # Tiny block: full static unroll keeps every index static.
        h = h_state[...]
        for t in range(Tb):
            h = step(t, h)
    else:
        # Bounded unroll: LLO visibility without blowing past 64 vregs.
        h = jax.lax.fori_loop(0, Tb, step, h_state[...], unroll=unroll)

    h_state[...] = h


@functools.partial(
    jax.jit,
    static_argnames=("time_block", "batch_block", "matmul_dtype",
                     "vmem_budget_bytes", "unroll"))
def encoder_forward(sequence, emb_table, w_i, w_h, b_i, b_h, *,
                    time_block=32, batch_block=128,
                    matmul_dtype=jnp.bfloat16,
                    vmem_budget_bytes=32 * 1024 * 1024, unroll=4):
    """sequence: (B, T) int32 token ids. Returns (hs, h) like nn.GRU(batch_first=True).

    Weight layout (PyTorch gate order r, z, n):
      w_i: (3, E, H), w_h: (3, H, H), b_i: (3, 1, H), b_h: (3, 1, H)
    """
    B, T = sequence.shape
    E = emb_table.shape[1]
    H = w_h.shape[2]
    mx_dtype = jnp.dtype(matmul_dtype)

    # Lane/sublane-aligned padded sizes.
    Hp = _round_up(H, 128)                       # per-gate lane width
    Bb = min(_round_up(B, 8), _round_up(batch_block, 8))
    B_pad = _round_up(_round_up(B, 8), Bb)

    # ---- Embedding (padding_idx=0 => row 0 of the table is zero) -----------
    # Gather directly in time-major order: (T, B, E); no big transpose.
    emb_tm = jnp.take(emb_table, sequence.T, axis=0)

    # ---- Fuse / pad weights, fold biases (gate order r, z, n) --------------
    w_i_p = jnp.pad(w_i, ((0, 0), (0, 0), (0, Hp - H)))              # (3, E, Hp)
    w_h_p = jnp.pad(w_h, ((0, 0), (0, Hp - H), (0, Hp - H)))         # (3, Hp, Hp)
    w_i_f = jnp.transpose(w_i_p, (1, 0, 2)).reshape(E, 3 * Hp)       # (E, 3Hp)
    w_h_f = jnp.transpose(w_h_p, (1, 0, 2)).reshape(Hp, 3 * Hp).astype(mx_dtype)

    b_i2 = jnp.pad(b_i.reshape(3, H), ((0, 0), (0, Hp - H)))
    b_h2 = jnp.pad(b_h.reshape(3, H), ((0, 0), (0, Hp - H)))
    # Fold b_i (all gates) and b_h (r, z) into the hoisted projection;
    # b_h[n] must stay inside r * (h @ W_hn + b_hn).
    b_fold = jnp.concatenate(
        [b_i2[0] + b_h2[0], b_i2[1] + b_h2[1], b_i2[2]], axis=-1)[None, :]
    b_hn = b_h2[2][None, :]                                          # (1, Hp) f32

    # ---- Hoisted input projection: one big parallel matmul (f32 accumulate),
    #      stored as bf16 to halve the dominant HBM stream into the kernel. --
    gi = jnp.dot(emb_tm.reshape(T * B, E), w_i_f,
                 preferred_element_type=jnp.float32) + b_fold
    gi = gi.reshape(T, B, 3 * Hp)

    # ---- Block sizes from an explicit VMEM budget ---------------------------
    Tb = _pick_time_block(T, Bb, Hp, mx_dtype.itemsize, time_block,
                          vmem_budget_bytes)
    num_t = pl.cdiv(T, Tb)
    T_pad = num_t * Tb
    num_b = B_pad // Bb

    gi = jnp.pad(gi, ((0, T_pad - T), (0, B_pad - B), (0, 0))).astype(mx_dtype)

    grid_spec = pltpu.PrefetchScalarGridSpec(
        num_scalar_prefetch=0,
        grid=(num_b, num_t),
        in_specs=[
            pl.BlockSpec((Tb, Bb, 3 * Hp), lambda bb, tb: (tb, bb, 0)),  # gi
            _weight_spec((Hp, 3 * Hp), lambda bb, tb: (0, 0)),           # W_h
            _weight_spec((1, Hp), lambda bb, tb: (0, 0)),                # b_h[n]
        ],
        out_specs=pl.BlockSpec((Tb, Bb, Hp), lambda bb, tb: (tb, bb, 0)),
        scratch_shapes=[pltpu.VMEM((Bb, Hp), jnp.float32)],
    )

    hs_tm = pl.pallas_call(
        functools.partial(_gru_kernel, unroll=unroll),
        out_shape=jax.ShapeDtypeStruct((T_pad, B_pad, Hp), jnp.float32),
        grid_spec=grid_spec,
        compiler_params=pltpu.CompilerParams(
            # Batch blocks are independent (uses v7x's second TensorCore);
            # the time axis is a serial recurrence.
            dimension_semantics=("parallel", "arbitrary"),
            vmem_limit_bytes=int(1.5 * vmem_budget_bytes),
        ),
    )(gi, w_h_f, b_hn)

    # Cheap layout plumbing back to nn.GRU(batch_first=True) conventions.
    hs = jnp.transpose(hs_tm[:T, :B, :H], (1, 0, 2))   # (B, T, H)
    h = hs[:, T - 1, :][None]                          # (1, B, H)
    return hs, h


def _reference_forward(sequence, emb_table, w_i, w_h, b_i, b_h):
    """Pure-JAX reference of Embedding + GRU (PyTorch semantics)."""
    emb = jnp.take(emb_table, sequence, axis=0)   # (B, T, E)
    B, T, _ = emb.shape

    def step(h_prev, x_t):
        gi = jnp.einsum("be,geh->gbh", x_t, w_i) + b_i   # (3, B, H)
        gh = jnp.einsum("bh,ghk->gbk", h_prev, w_h) + b_h
        r = jax.nn.sigmoid(gi[0] + gh[0])
        z = jax.nn.sigmoid(gi[1] + gh[1])
        n = jnp.tanh(gi[2] + r * gh[2])
        h_new = (1.0 - z) * n + z * h_prev
        return h_new, h_new

    h0 = jnp.zeros((B, w_h.shape[1]), jnp.float32)
    h_last, hs_tm = jax.lax.scan(step, h0, jnp.transpose(emb, (1, 0, 2)))
    return jnp.transpose(hs_tm, (1, 0, 2)), h_last[None]


if __name__ == "__main__":
    vocab_size = 32
    embedding_dim = 16
    hidden_dim = 32
    B, T = 2, 8

    key = jax.random.PRNGKey(0)
    k_emb, k_wi, k_wh, k_bi, k_bh, k_seq, k_seq2 = jax.random.split(key, 7)

    scale = 1.0 / np.sqrt(hidden_dim)
    emb_table = jax.random.normal(k_emb, (vocab_size, embedding_dim), jnp.float32) * 0.1
    emb_table = emb_table.at[0].set(0.0)  # padding_idx=0
    w_i = jax.random.uniform(k_wi, (3, embedding_dim, hidden_dim), jnp.float32,
                             -scale, scale)
    w_h = jax.random.uniform(k_wh, (3, hidden_dim, hidden_dim), jnp.float32,
                             -scale, scale)
    b_i = jax.random.uniform(k_bi, (3, 1, hidden_dim), jnp.float32, -scale, scale)
    b_h = jax.random.uniform(k_bh, (3, 1, hidden_dim), jnp.float32, -scale, scale)

    sequence = jax.random.randint(k_seq, (B, T), 0, vocab_size, jnp.int32)
    sequence = sequence.at[:, -2:].set(0)  # exercise padding tokens

    hs_ref, h_ref = _reference_forward(sequence, emb_table, w_i, w_h, b_i, b_h)

    # --- f32 mode: exact algorithmic check (static-unroll path, Tb = 8) -----
    hs32, h32 = encoder_forward(sequence, emb_table, w_i, w_h, b_i, b_h,
                                matmul_dtype=jnp.float32)
    hs32, h32 = jax.block_until_ready((hs32, h32))
    np.testing.assert_allclose(np.asarray(hs32), np.asarray(hs_ref),
                               rtol=1e-4, atol=1e-4)
    np.testing.assert_allclose(np.asarray(h32), np.asarray(h_ref),
                               rtol=1e-4, atol=1e-4)

    # --- default bf16-MXU mode (f32 carry/accumulate): looser tolerance -----
    hs, h = encoder_forward(sequence, emb_table, w_i, w_h, b_i, b_h)
    hs, h = jax.block_until_ready((hs, h))
    assert hs.shape == (B, T, hidden_dim), hs.shape
    assert h.shape == (1, B, hidden_dim), h.shape
    np.testing.assert_allclose(np.asarray(hs), np.asarray(hs_ref),
                               rtol=2e-2, atol=2e-2)
    np.testing.assert_allclose(np.asarray(h), np.asarray(h_ref),
                               rtol=2e-2, atol=2e-2)

    # --- longer run: exercises fori_loop path, multi time blocks, carry
    #     across grid steps and batch padding (B=3 -> Bb=8) ------------------
    B2, T2 = 3, 24
    seq2 = jax.random.randint(k_seq2, (B2, T2), 0, vocab_size, jnp.int32)
    seq2 = seq2.at[:, -3:].set(0)
    hs2_ref, h2_ref = _reference_forward(seq2, emb_table, w_i, w_h, b_i, b_h)
    hs2, h2 = encoder_forward(seq2, emb_table, w_i, w_h, b_i, b_h,
                              time_block=16, matmul_dtype=jnp.float32)
    hs2, h2 = jax.block_until_ready((hs2, h2))
    assert hs2.shape == (B2, T2, hidden_dim), hs2.shape
    assert h2.shape == (1, B2, hidden_dim), h2.shape
    np.testing.assert_allclose(np.asarray(hs2), np.asarray(hs2_ref),
                               rtol=1e-4, atol=1e-4)
    np.testing.assert_allclose(np.asarray(h2), np.asarray(h2_ref),
                               rtol=1e-4, atol=1e-4)

    print("KERNEL_OK")
</pallas_src>

<mosaic_0001>
module attributes {stable_mosaic.version = 11 : i64} {
  func.func @_k(%arg0: i32, %arg1: memref<8x128xf32, #tpu.memory_space<vmem>>, %arg2: memref<8x128xf32, #tpu.memory_space<vmem>>) attributes {dimension_semantics = [#tpu.dimension_semantics<arbitrary>], iteration_bounds = array<i64: 2>, scalar_prefetch = 0 : i64, scratch_operands = 0 : i64, tpu.core_type = #tpu.core_type<tc>, window_params = [{pipeline_mode = #tpu.pipeline_mode<synchronous>, transform_indices = @transform_0, window_bounds = array<i64: 8, 128>}, {transform_indices = @transform_1, window_bounds = array<i64: 8, 128>}]} {
    %c0 = arith.constant 0 : index
    %c0_0 = arith.constant 0 : index
    %0 = vector.load %arg1[%c0, %c0_0] : memref<8x128xf32, #tpu.memory_space<vmem>>, vector<8x128xf32>
    %cst = arith.constant 2.000000e+00 : f32
    %1 = vector.broadcast %cst : f32 to vector<8x128xf32>
    %2 = arith.mulf %0, %1 : vector<8x128xf32>
    %c0_1 = arith.constant 0 : index
    %c0_2 = arith.constant 0 : index
    %3 = vector.load %arg2[%c0_1, %c0_2] : memref<8x128xf32, #tpu.memory_space<vmem>>, vector<8x128xf32>
    tpu.vector_store %arg2[%c0_1, %c0_2], %2 {strides = array<i32>} : memref<8x128xf32, #tpu.memory_space<vmem>>, vector<8x128xf32>,
    return
  }
  func.func @transform_0(%arg0: i32) -> (i32, i32) {
    %c0_i32 = arith.constant 0 : i32
    %c0_i32_0 = arith.constant 0 : i32
    %c0_i32_1 = arith.constant 0 : i32
    return %c0_i32, %c0_i32_0 : i32, i32
  }
  func.func @transform_1(%arg0: i32) -> (i32, i32) {
    %c0_i32 = arith.constant 0 : i32
    %c0_i32_0 = arith.constant 0 : i32
    return %arg0, %c0_i32 : i32, i32
  }
}

module attributes {stable_mosaic.version = 11 : i64} {
  func.func @_gru_kernel(%arg0: i32, %arg1: i32, %arg2: memref<8x8x384xf32, #tpu.memory_space<vmem>>, %arg3: memref<128x384xf32, #tpu.memory_space<vmem>>, %arg4: memref<1x128xf32, #tpu.memory_space<vmem>>, %arg5: memref<8x8x128xf32, #tpu.memory_space<vmem>>, %arg6: memref<8x128xf32, #tpu.memory_space<vmem>>) attributes {dimension_semantics = [#tpu.dimension_semantics<parallel>, #tpu.dimension_semantics<arbitrary>], iteration_bounds = array<i64: 1, 1>, scalar_prefetch = 0 : i64, scratch_operands = 1 : i64, tpu.core_type = #tpu.core_type<tc>, window_params = [{transform_indices = @transform_0, window_bounds = array<i64: 8, 8, 384>}, {pipeline_mode = #tpu.pipeline_mode<synchronous>, transform_indices = @transform_1, window_bounds = array<i64: 128, 384>}, {pipeline_mode = #tpu.pipeline_mode<synchronous>, transform_indices = @transform_2, window_bounds = array<i64: 1, 128>}, {transform_indices = @transform_3, window_bounds = array<i64: 8, 8, 128>}]} {
    %c0_i32 = arith.constant 0 : i32
    %0 = arith.cmpi eq, %arg1, %c0_i32 : i32
    %1 = arith.extui %0 : i1 to i32
    %c0_i32_0 = arith.constant 0 : i32
    %2 = arith.cmpi ne, %1, %c0_i32_0 : i32
    scf.if %2 {
      %cst_72 = arith.constant 0.000000e+00 : f32
      %225 = vector.broadcast %cst_72 : f32 to vector<8x128xf32>
      %c0_73 = arith.constant 0 : index
      %c0_74 = arith.constant 0 : index
      %226 = vector.load %arg6[%c0_73, %c0_74] : memref<8x128xf32, #tpu.memory_space<vmem>>, vector<8x128xf32>
      tpu.vector_store %arg6[%c0_73, %c0_74], %225 {strides = array<i32>} : memref<8x128xf32, #tpu.memory_space<vmem>>, vector<8x128xf32>,
    } else {
    }
    %c0 = arith.constant 0 : index
    %c0_1 = arith.constant 0 : index
    %3 = vector.load %arg3[%c0, %c0_1] : memref<128x384xf32, #tpu.memory_space<vmem>>, vector<128x384xf32>
    %c0_2 = arith.constant 0 : index
    %c0_3 = arith.constant 0 : index
    %4 = vector.load %arg4[%c0_2, %c0_3] : memref<1x128xf32, #tpu.memory_space<vmem>>, vector<1x128xf32>
    %5 = vector.shape_cast %4 : vector<1x128xf32> to vector<1x128xf32>
    %6 = vector.broadcast %5 : vector<1x128xf32> to vector<8x128xf32>
    %c0_4 = arith.constant 0 : index
    %c0_5 = arith.constant 0 : index
    %7 = vector.load %arg6[%c0_4, %c0_5] : memref<8x128xf32, #tpu.memory_space<vmem>>, vector<8x128xf32>
    %c0_6 = arith.constant 0 : index
    %c0_7 = arith.constant 0 : index
    %c0_8 = arith.constant 0 : index
    %8 = vector.load %arg2[%c0_6, %c0_7, %c0_8] : memref<8x8x384xf32, #tpu.memory_space<vmem>>, vector<1x8x384xf32>
    %9 = vector.shape_cast %8 : vector<1x8x384xf32> to vector<8x384xf32>
    %cst = arith.constant dense<0.000000e+00> : vector<8x384xf32>
    %10 = tpu.matmul %7, %3, %cst {dimension_numbers = #tpu.dot_dimension_numbers<[1], [0], [0], [1], [0, 0, 1, 1], [], []>} : vector<8x128xf32>, vector<128x384xf32>, vector<8x384xf32> -> vector<8x384xf32>
    %11 = vector.extract_strided_slice %9 {offsets = [0, 0], sizes = [8, 256], strides = [1, 1]} : vector<8x384xf32> to vector<8x256xf32>
    %12 = vector.extract_strided_slice %10 {offsets = [0, 0], sizes = [8, 256], strides = [1, 1]} : vector<8x384xf32> to vector<8x256xf32>
    %13 = arith.addf %11, %12 : vector<8x256xf32>
    %14 = arith.negf %13 : vector<8x256xf32>
    %15 = math.exp %14 : vector<8x256xf32>
    %cst_9 = arith.constant 1.000000e+00 : f32
    %16 = vector.broadcast %cst_9 : f32 to vector<8x256xf32>
    %17 = arith.addf %16, %15 : vector<8x256xf32>
    %18 = arith.divf %16, %17 : vector<8x256xf32>
    %19 = vector.extract_strided_slice %18 {offsets = [0, 0], sizes = [8, 128], strides = [1, 1]} : vector<8x256xf32> to vector<8x128xf32>
    %20 = vector.extract_strided_slice %18 {offsets = [0, 128], sizes = [8, 128], strides = [1, 1]} : vector<8x256xf32> to vector<8x128xf32>
    %21 = vector.extract_strided_slice %9 {offsets = [0, 256], sizes = [8, 128], strides = [1, 1]} : vector<8x384xf32> to vector<8x128xf32>
    %22 = vector.extract_strided_slice %10 {offsets = [0, 256], sizes = [8, 128], strides = [1, 1]} : vector<8x384xf32> to vector<8x128xf32>
    %23 = arith.addf %22, %6 : vector<8x128xf32>
    %24 = arith.mulf %19, %23 : vector<8x128xf32>
    %25 = arith.addf %21, %24 : vector<8x128xf32>
    %26 = math.tanh %25 : vector<8x128xf32>
    %cst_10 = arith.constant 1.000000e+00 : f32
    %27 = vector.broadcast %cst_10 : f32 to vector<8x128xf32>
    %28 = arith.subf %27, %20 : vector<8x128xf32>
    %29 = arith.mulf %28, %26 : vector<8x128xf32>
    %30 = arith.mulf %20, %7 : vector<8x128xf32>
    %31 = arith.addf %29, %30 : vector<8x128xf32>
    %c0_11 = arith.constant 0 : index
    %c0_12 = arith.constant 0 : index
    %c0_13 = arith.constant 0 : index
    %32 = vector.load %arg5[%c0_11, %c0_12, %c0_13] : memref<8x8x128xf32, #tpu.memory_space<vmem>>, vector<1x8x128xf32>
    %33 = vector.shape_cast %32 : vector<1x8x128xf32> to vector<8x128xf32>
    %34 = vector.shape_cast %31 : vector<8x128xf32> to vector<1x8x128xf32>
    tpu.vector_store %arg5[%c0_11, %c0_12, %c0_13], %34 {strides = array<i32>} : memref<8x8x128xf32, #tpu.memory_space<vmem>>, vector<1x8x128xf32>,
    %c1 = arith.constant 1 : index
    %c0_14 = arith.constant 0 : index
    %c0_15 = arith.constant 0 : index
    %35 = vector.load %arg2[%c1, %c0_14, %c0_15] : memref<8x8x384xf32, #tpu.memory_space<vmem>>, vector<1x8x384xf32>
    %36 = vector.shape_cast %35 : vector<1x8x384xf32> to vector<8x384xf32>
    %cst_16 = arith.constant dense<0.000000e+00> : vector<8x384xf32>
    %37 = tpu.matmul %31, %3, %cst_16 {dimension_numbers = #tpu.dot_dimension_numbers<[1], [0], [0], [1], [0, 0, 1, 1], [], []>} : vector<8x128xf32>, vector<128x384xf32>, vector<8x384xf32> -> vector<8x384xf32>
    %38 = vector.extract_strided_slice %36 {offsets = [0, 0], sizes = [8, 256], strides = [1, 1]} : vector<8x384xf32> to vector<8x256xf32>
    %39 = vector.extract_strided_slice %37 {offsets = [0, 0], sizes = [8, 256], strides = [1, 1]} : vector<8x384xf32> to vector<8x256xf32>
    %40 = arith.addf %38, %39 : vector<8x256xf32>
    %41 = arith.negf %40 : vector<8x256xf32>
    %42 = math.exp %41 : vector<8x256xf32>
    %cst_17 = arith.constant 1.000000e+00 : f32
    %43 = vector.broadcast %cst_17 : f32 to vector<8x256xf32>
    %44 = arith.addf %43, %42 : vector<8x256xf32>
    %45 = arith.divf %43, %44 : vector<8x256xf32>
    %46 = vector.extract_strided_slice %45 {offsets = [0, 0], sizes = [8, 128], strides = [1, 1]} : vector<8x256xf32> to vector<8x128xf32>
    %47 = vector.extract_strided_slice %45 {offsets = [0, 128], sizes = [8, 128], strides = [1, 1]} : vector<8x256xf32> to vector<8x128xf32>
    %48 = vector.extract_strided_slice %36 {offsets = [0, 256], sizes = [8, 128], strides = [1, 1]} : vector<8x384xf32> to vector<8x128xf32>
    %49 = vector.extract_strided_slice %37 {offsets = [0, 256], sizes = [8, 128], strides = [1, 1]} : vector<8x384xf32> to vector<8x128xf32>
    %50 = arith.addf %49, %6 : vector<8x128xf32>
    %51 = arith.mulf %46, %50 : vector<8x128xf32>
    %52 = arith.addf %48, %51 : vector<8x128xf32>
    %53 = math.tanh %52 : vector<8x128xf32>
    %cst_18 = arith.constant 1.000000e+00 : f32
    %54 = vector.broadcast %cst_18 : f32 to vector<8x128xf32>
    %55 = arith.subf %54, %47 : vector<8x128xf32>
    %56 = arith.mulf %55, %53 : vector<8x128xf32>
    %57 = arith.mulf %47, %31 : vector<8x128xf32>
    %58 = arith.addf %56, %57 : vector<8x128xf32>
    %c1_19 = arith.constant 1 : index
    %c0_20 = arith.constant 0 : index
    %c0_21 = arith.constant 0 : index
    %59 = vector.load %arg5[%c1_19, %c0_20, %c0_21] : memref<8x8x128xf32, #tpu.memory_space<vmem>>, vector<1x8x128xf32>
    %60 = vector.shape_cast %59 : vector<1x8x128xf32> to vector<8x128xf32>
    %61 = vector.shape_cast %58 : vector<8x128xf32> to vector<1x8x128xf32>
    tpu.vector_store %arg5[%c1_19, %c0_20, %c0_21], %61 {strides = array<i32>} : memref<8x8x128xf32, #tpu.memory_space<vmem>>, vector<1x8x128xf32>,
    %c2 = arith.constant 2 : index
    %c0_22 = arith.constant 0 : index
    %c0_23 = arith.constant 0 : index
    %62 = vector.load %arg2[%c2, %c0_22, %c0_23] : memref<8x8x384xf32, #tpu.memory_space<vmem>>, vector<1x8x384xf32>
    %63 = vector.shape_cast %62 : vector<1x8x384xf32> to vector<8x384xf32>
    %cst_24 = arith.constant dense<0.000000e+00> : vector<8x384xf32>
    %64 = tpu.matmul %58, %3, %cst_24 {dimension_numbers = #tpu.dot_dimension_numbers<[1], [0], [0], [1], [0, 0, 1, 1], [], []>} : vector<8x128xf32>, vector<128x384xf32>, vector<8x384xf32> -> vector<8x384xf32>
    %65 = vector.extract_strided_slice %63 {offsets = [0, 0], sizes = [8, 256], strides = [1, 1]} : vector<8x384xf32> to vector<8x256xf32>
    %66 = vector.extract_strided_slice %64 {offsets = [0, 0], sizes = [8, 256], strides = [1, 1]} : vector<8x384xf32> to vector<8x256xf32>
    %67 = arith.addf %65, %66 : vector<8x256xf32>
    %68 = arith.negf %67 : vector<8x256xf32>
    %69 = math.exp %68 : vector<8x256xf32>
    %cst_25 = arith.constant 1.000000e+00 : f32
    %70 = vector.broadcast %cst_25 : f32 to vector<8x256xf32>
    %71 = arith.addf %70, %69 : vector<8x256xf32>
    %72 = arith.divf %70, %71 : vector<8x256xf32>
    %73 = vector.extract_strided_slice %72 {offsets = [0, 0], sizes = [8, 128], strides = [1, 1]} : vector<8x256xf32> to vector<8x128xf32>
    %74 = vector.extract_strided_slice %72 {offsets = [0, 128], sizes = [8, 128], strides = [1, 1]} : vector<8x256xf32> to vector<8x128xf32>
    %75 = vector.extract_strided_slice %63 {offsets = [0, 256], sizes = [8, 128], strides = [1, 1]} : vector<8x384xf32> to vector<8x128xf32>
    %76 = vector.extract_strided_slice %64 {offsets = [0, 256], sizes = [8, 128], strides = [1, 1]} : vector<8x384xf32> to vector<8x128xf32>
    %77 = arith.addf %76, %6 : vector<8x128xf32>
    %78 = arith.mulf %73, %77 : vector<8x128xf32>
    %79 = arith.addf %75, %78 : vector<8x128xf32>
    %80 = math.tanh %79 : vector<8x128xf32>
    %cst_26 = arith.constant 1.000000e+00 : f32
    %81 = vector.broadcast %cst_26 : f32 to vector<8x128xf32>
    %82 = arith.subf %81, %74 : vector<8x128xf32>
    %83 = arith.mulf %82, %80 : vector<8x128xf32>
    %84 = arith.mulf %74, %58 : vector<8x128xf32>
    %85 = arith.addf %83, %84 : vector<8x128xf32>
    %c2_27 = arith.constant 2 : index
    %c0_28 = arith.constant 0 : index
    %c0_29 = arith.constant 0 : index
    %86 = vector.load %arg5[%c2_27, %c0_28, %c0_29] : memref<8x8x128xf32, #tpu.memory_space<vmem>>, vector<1x8x128xf32>
    %87 = vector.shape_cast %86 : vector<1x8x128xf32> to vector<8x128xf32>
    %88 = vector.shape_cast %85 : vector<8x128xf32> to vector<1x8x128xf32>
    tpu.vector_store %arg5[%c2_27, %c0_28, %c0_29], %88 {strides = array<i32>} : memref<8x8x128xf32, #tpu.memory_space<vmem>>, vector<1x8x128xf32>,
    %c3 = arith.constant 3 : index
    %c0_30 = arith.constant 0 : index
    %c0_31 = arith.constant 0 : index
    %89 = vector.load %arg2[%c3, %c0_30, %c0_31] : memref<8x8x384xf32, #tpu.memory_space<vmem>>, vector<1x8x384xf32>
    %90 = vector.shape_cast %89 : vector<1x8x384xf32> to vector<8x384xf32>
    %cst_32 = arith.constant dense<0.000000e+00> : vector<8x384xf32>
    %91 = tpu.matmul %85, %3, %cst_32 {dimension_numbers = #tpu.dot_dimension_numbers<[1], [0], [0], [1], [0, 0, 1, 1], [], []>} : vector<8x128xf32>, vector<128x384xf32>, vector<8x384xf32> -> vector<8x384xf32>
    %92 = vector.extract_strided_slice %90 {offsets = [0, 0], sizes = [8, 256], strides = [1, 1]} : vector<8x384xf32> to vector<8x256xf32>
    %93 = vector.extract_strided_slice %91 {offsets = [0, 0], sizes = [8, 256], strides = [1, 1]} : vector<8x384xf32> to vector<8x256xf32>
    %94 = arith.addf %92, %93 : vector<8x256xf32>
    %95 = arith.negf %94 : vector<8x256xf32>
    %96 = math.exp %95 : vector<8x256xf32>
    %cst_33 = arith.constant 1.000000e+00 : f32
    %97 = vector.broadcast %cst_33 : f32 to vector<8x256xf32>
    %98 = arith.addf %97, %96 : vector<8x256xf32>
    %99 = arith.divf %97, %98 : vector<8x256xf32>
    %100 = vector.extract_strided_slice %99 {offsets = [0, 0], sizes = [8, 128], strides = [1, 1]} : vector<8x256xf32> to vector<8x128xf32>
    %101 = vector.extract_strided_slice %99 {offsets = [0, 128], sizes = [8, 128], strides = [1, 1]} : vector<8x256xf32> to vector<8x128xf32>
    %102 = vector.extract_strided_slice %90 {offsets = [0, 256], sizes = [8, 128], strides = [1, 1]} : vector<8x384xf32> to vector<8x128xf32>
    %103 = vector.extract_strided_slice %91 {offsets = [0, 256], sizes = [8, 128], strides = [1, 1]} : vector<8x384xf32> to vector<8x128xf32>
    %104 = arith.addf %103, %6 : vector<8x128xf32>
    %105 = arith.mulf %100, %104 : vector<8x128xf32>
    %106 = arith.addf %102, %105 : vector<8x128xf32>
    %107 = math.tanh %106 : vector<8x128xf32>
    %cst_34 = arith.constant 1.000000e+00 : f32
    %108 = vector.broadcast %cst_34 : f32 to vector<8x128xf32>
    %109 = arith.subf %108, %101 : vector<8x128xf32>
    %110 = arith.mulf %109, %107 : vector<8x128xf32>
    %111 = arith.mulf %101, %85 : vector<8x128xf32>
    %112 = arith.addf %110, %111 : vector<8x128xf32>
    %c3_35 = arith.constant 3 : index
    %c0_36 = arith.constant 0 : index
    %c0_37 = arith.constant 0 : index
    %113 = vector.load %arg5[%c3_35, %c0_36, %c0_37] : memref<8x8x128xf32, #tpu.memory_space<vmem>>, vector<1x8x128xf32>
    %114 = vector.shape_cast %113 : vector<1x8x128xf32> to vector<8x128xf32>
    %115 = vector.shape_cast %112 : vector<8x128xf32> to vector<1x8x128xf32>
    tpu.vector_store %arg5[%c3_35, %c0_36, %c0_37], %115 {strides = array<i32>} : memref<8x8x128xf32, #tpu.memory_space<vmem>>, vector<1x8x128xf32>,
    %c4 = arith.constant 4 : index
    %c0_38 = arith.constant 0 : index
    %c0_39 = arith.constant 0 : index
    %116 = vector.load %arg2[%c4, %c0_38, %c0_39] : memref<8x8x384xf32, #tpu.memory_space<vmem>>, vector<1x8x384xf32>
    %117 = vector.shape_cast %116 : vector<1x8x384xf32> to vector<8x384xf32>
    %cst_40 = arith.constant dense<0.000000e+00> : vector<8x384xf32>
    %118 = tpu.matmul %112, %3, %cst_40 {dimension_numbers = #tpu.dot_dimension_numbers<[1], [0], [0], [1], [0, 0, 1, 1], [], []>} : vector<8x128xf32>, vector<128x384xf32>, vector<8x384xf32> -> vector<8x384xf32>
    %119 = vector.extract_strided_slice %117 {offsets = [0, 0], sizes = [8, 256], strides = [1, 1]} : vector<8x384xf32> to vector<8x256xf32>
    %120 = vector.extract_strided_slice %118 {offsets = [0, 0], sizes = [8, 256], strides = [1, 1]} : vector<8x384xf32> to vector<8x256xf32>
    %121 = arith.addf %119, %120 : vector<8x256xf32>
    %122 = arith.negf %121 : vector<8x256xf32>
    %123 = math.exp %122 : vector<8x256xf32>
    %cst_41 = arith.constant 1.000000e+00 : f32
    %124 = vector.broadcast %cst_41 : f32 to vector<8x256xf32>
    %125 = arith.addf %124, %123 : vector<8x256xf32>
    %126 = arith.divf %124, %125 : vector<8x256xf32>
    %127 = vector.extract_strided_slice %126 {offsets = [0, 0], sizes = [8, 128], strides = [1, 1]} : vector<8x256xf32> to vector<8x128xf32>
    %128 = vector.extract_strided_slice %126 {offsets = [0, 128], sizes = [8, 128], strides = [1, 1]} : vector<8x256xf32> to vector<8x128xf32>
    %129 = vector.extract_strided_slice %117 {offsets = [0, 256], sizes = [8, 128], strides = [1, 1]} : vector<8x384xf32> to vector<8x128xf32>
    %130 = vector.extract_strided_slice %118 {offsets = [0, 256], sizes = [8, 128], strides = [1, 1]} : vector<8x384xf32> to vector<8x128xf32>
    %131 = arith.addf %130, %6 : vector<8x128xf32>
    %132 = arith.mulf %127, %131 : vector<8x128xf32>
    %133 = arith.addf %129, %132 : vector<8x128xf32>
    %134 = math.tanh %133 : vector<8x128xf32>
    %cst_42 = arith.constant 1.000000e+00 : f32
    %135 = vector.broadcast %cst_42 : f32 to vector<8x128xf32>
    %136 = arith.subf %135, %128 : vector<8x128xf32>
    %137 = arith.mulf %136, %134 : vector<8x128xf32>
    %138 = arith.mulf %128, %112 : vector<8x128xf32>
    %139 = arith.addf %137, %138 : vector<8x128xf32>
    %c4_43 = arith.constant 4 : index
    %c0_44 = arith.constant 0 : index
    %c0_45 = arith.constant 0 : index
    %140 = vector.load %arg5[%c4_43, %c0_44, %c0_45] : memref<8x8x128xf32, #tpu.memory_space<vmem>>, vector<1x8x128xf32>
    %141 = vector.shape_cast %140 : vector<1x8x128xf32> to vector<8x128xf32>
    %142 = vector.shape_cast %139 : vector<8x128xf32> to vector<1x8x128xf32>
    tpu.vector_store %arg5[%c4_43, %c0_44, %c0_45], %142 {strides = array<i32>} : memref<8x8x128xf32, #tpu.memory_space<vmem>>, vector<1x8x128xf32>,
    %c5 = arith.constant 5 : index
    %c0_46 = arith.constant 0 : index
    %c0_47 = arith.constant 0 : index
    %143 = vector.load %arg2[%c5, %c0_46, %c0_47] : memref<8x8x384xf32, #tpu.memory_space<vmem>>, vector<1x8x384xf32>
    %144 = vector.shape_cast %143 : vector<1x8x384xf32> to vector<8x384xf32>
    %cst_48 = arith.constant dense<0.000000e+00> : vector<8x384xf32>
    %145 = tpu.matmul %139, %3, %cst_48 {dimension_numbers = #tpu.dot_dimension_numbers<[1], [0], [0], [1], [0, 0, 1, 1], [], []>} : vector<8x128xf32>, vector<128x384xf32>, vector<8x384xf32> -> vector<8x384xf32>
    %146 = vector.extract_strided_slice %144 {offsets = [0, 0], sizes = [8, 256], strides = [1, 1]} : vector<8x384xf32> to vector<8x256xf32>
    %147 = vector.extract_strided_slice %145 {offsets = [0, 0], sizes = [8, 256], strides = [1, 1]} : vector<8x384xf32> to vector<8x256xf32>
    %148 = arith.addf %146, %147 : vector<8x256xf32>
    %149 = arith.negf %148 : vector<8x256xf32>
    %150 = math.exp %149 : vector<8x256xf32>
    %cst_49 = arith.constant 1.000000e+00 : f32
    %151 = vector.broadcast %cst_49 : f32 to vector<8x256xf32>
    %152 = arith.addf %151, %150 : vector<8x256xf32>
    %153 = arith.divf %151, %152 : vector<8x256xf32>
    %154 = vector.extract_strided_slice %153 {offsets = [0, 0], sizes = [8, 128], strides = [1, 1]} : vector<8x256xf32> to vector<8x128xf32>
    %155 = vector.extract_strided_slice %153 {offsets = [0, 128], sizes = [8, 128], strides = [1, 1]} : vector<8x256xf32> to vector<8x128xf32>
    %156 = vector.extract_strided_slice %144 {offsets = [0, 256], sizes = [8, 128], strides = [1, 1]} : vector<8x384xf32> to vector<8x128xf32>
    %157 = vector.extract_strided_slice %145 {offsets = [0, 256], sizes = [8, 128], strides = [1, 1]} : vector<8x384xf32> to vector<8x128xf32>
    %158 = arith.addf %157, %6 : vector<8x128xf32>
    %159 = arith.mulf %154, %158 : vector<8x128xf32>
    %160 = arith.addf %156, %159 : vector<8x128xf32>
    %161 = math.tanh %160 : vector<8x128xf32>
    %cst_50 = arith.constant 1.000000e+00 : f32
    %162 = vector.broadcast %cst_50 : f32 to vector<8x128xf32>
    %163 = arith.subf %162, %155 : vector<8x128xf32>
    %164 = arith.mulf %163, %161 : vector<8x128xf32>
    %165 = arith.mulf %155, %139 : vector<8x128xf32>
    %166 = arith.addf %164, %165 : vector<8x128xf32>
    %c5_51 = arith.constant 5 : index
    %c0_52 = arith.constant 0 : index
    %c0_53 = arith.constant 0 : index
    %167 = vector.load %arg5[%c5_51, %c0_52, %c0_53] : memref<8x8x128xf32, #tpu.memory_space<vmem>>, vector<1x8x128xf32>
    %168 = vector.shape_cast %167 : vector<1x8x128xf32> to vector<8x128xf32>
    %169 = vector.shape_cast %166 : vector<8x128xf32> to vector<1x8x128xf32>
    tpu.vector_store %arg5[%c5_51, %c0_52, %c0_53], %169 {strides = array<i32>} : memref<8x8x128xf32, #tpu.memory_space<vmem>>, vector<1x8x128xf32>,
    %c6 = arith.constant 6 : index
    %c0_54 = arith.constant 0 : index
    %c0_55 = arith.constant 0 : index
    %170 = vector.load %arg2[%c6, %c0_54, %c0_55] : memref<8x8x384xf32, #tpu.memory_space<vmem>>, vector<1x8x384xf32>
    %171 = vector.shape_cast %170 : vector<1x8x384xf32> to vector<8x384xf32>
    %cst_56 = arith.constant dense<0.000000e+00> : vector<8x384xf32>
    %172 = tpu.matmul %166, %3, %cst_56 {dimension_numbers = #tpu.dot_dimension_numbers<[1], [0], [0], [1], [0, 0, 1, 1], [], []>} : vector<8x128xf32>, vector<128x384xf32>, vector<8x384xf32> -> vector<8x384xf32>
    %173 = vector.extract_strided_slice %171 {offsets = [0, 0], sizes = [8, 256], strides = [1, 1]} : vector<8x384xf32> to vector<8x256xf32>
    %174 = vector.extract_strided_slice %172 {offsets = [0, 0], sizes = [8, 256], strides = [1, 1]} : vector<8x384xf32> to vector<8x256xf32>
    %175 = arith.addf %173, %174 : vector<8x256xf32>
    %176 = arith.negf %175 : vector<8x256xf32>
    %177 = math.exp %176 : vector<8x256xf32>
    %cst_57 = arith.constant 1.000000e+00 : f32
    %178 = vector.broadcast %cst_57 : f32 to vector<8x256xf32>
    %179 = arith.addf %178, %177 : vector<8x256xf32>
    %180 = arith.divf %178, %179 : vector<8x256xf32>
    %181 = vector.extract_strided_slice %180 {offsets = [0, 0], sizes = [8, 128], strides = [1, 1]} : vector<8x256xf32> to vector<8x128xf32>
    %182 = vector.extract_strided_slice %180 {offsets = [0, 128], sizes = [8, 128], strides = [1, 1]} : vector<8x256xf32> to vector<8x128xf32>
    %183 = vector.extract_strided_slice %171 {offsets = [0, 256], sizes = [8, 128], strides = [1, 1]} : vector<8x384xf32> to vector<8x128xf32>
    %184 = vector.extract_strided_slice %172 {offsets = [0, 256], sizes = [8, 128], strides = [1, 1]} : vector<8x384xf32> to vector<8x128xf32>
    %185 = arith.addf %184, %6 : vector<8x128xf32>
    %186 = arith.mulf %181, %185 : vector<8x128xf32>
    %187 = arith.addf %183, %186 : vector<8x128xf32>
    %188 = math.tanh %187 : vector<8x128xf32>
    %cst_58 = arith.constant 1.000000e+00 : f32
    %189 = vector.broadcast %cst_58 : f32 to vector<8x128xf32>
    %190 = arith.subf %189, %182 : vector<8x128xf32>
    %191 = arith.mulf %190, %188 : vector<8x128xf32>
    %192 = arith.mulf %182, %166 : vector<8x128xf32>
    %193 = arith.addf %191, %192 : vector<8x128xf32>
    %c6_59 = arith.constant 6 : index
    %c0_60 = arith.constant 0 : index
    %c0_61 = arith.constant 0 : index
    %194 = vector.load %arg5[%c6_59, %c0_60, %c0_61] : memref<8x8x128xf32, #tpu.memory_space<vmem>>, vector<1x8x128xf32>
    %195 = vector.shape_cast %194 : vector<1x8x128xf32> to vector<8x128xf32>
    %196 = vector.shape_cast %193 : vector<8x128xf32> to vector<1x8x128xf32>
    tpu.vector_store %arg5[%c6_59, %c0_60, %c0_61], %196 {strides = array<i32>} : memref<8x8x128xf32, #tpu.memory_space<vmem>>, vector<1x8x128xf32>,
    %c7 = arith.constant 7 : index
    %c0_62 = arith.constant 0 : index
    %c0_63 = arith.constant 0 : index
    %197 = vector.load %arg2[%c7, %c0_62, %c0_63] : memref<8x8x384xf32, #tpu.memory_space<vmem>>, vector<1x8x384xf32>
    %198 = vector.shape_cast %197 : vector<1x8x384xf32> to vector<8x384xf32>
    %cst_64 = arith.constant dense<0.000000e+00> : vector<8x384xf32>
    %199 = tpu.matmul %193, %3, %cst_64 {dimension_numbers = #tpu.dot_dimension_numbers<[1], [0], [0], [1], [0, 0, 1, 1], [], []>} : vector<8x128xf32>, vector<128x384xf32>, vector<8x384xf32> -> vector<8x384xf32>
    %200 = vector.extract_strided_slice %198 {offsets = [0, 0], sizes = [8, 256], strides = [1, 1]} : vector<8x384xf32> to vector<8x256xf32>
    %201 = vector.extract_strided_slice %199 {offsets = [0, 0], sizes = [8, 256], strides = [1, 1]} : vector<8x384xf32> to vector<8x256xf32>
    %202 = arith.addf %200, %201 : vector<8x256xf32>
    %203 = arith.negf %202 : vector<8x256xf32>
    %204 = math.exp %203 : vector<8x256xf32>
    %cst_65 = arith.constant 1.000000e+00 : f32
    %205 = vector.broadcast %cst_65 : f32 to vector<8x256xf32>
    %206 = arith.addf %205, %204 : vector<8x256xf32>
    %207 = arith.divf %205, %206 : vector<8x256xf32>
    %208 = vector.extract_strided_slice %207 {offsets = [0, 0], sizes = [8, 128], strides = [1, 1]} : vector<8x256xf32> to vector<8x128xf32>
    %209 = vector.extract_strided_slice %207 {offsets = [0, 128], sizes = [8, 128], strides = [1, 1]} : vector<8x256xf32> to vector<8x128xf32>
    %210 = vector.extract_strided_slice %198 {offsets = [0, 256], sizes = [8, 128], strides = [1, 1]} : vector<8x384xf32> to vector<8x128xf32>
    %211 = vector.extract_strided_slice %199 {offsets = [0, 256], sizes = [8, 128], strides = [1, 1]} : vector<8x384xf32> to vector<8x128xf32>
    %212 = arith.addf %211, %6 : vector<8x128xf32>
    %213 = arith.mulf %208, %212 : vector<8x128xf32>
    %214 = arith.addf %210, %213 : vector<8x128xf32>
    %215 = math.tanh %214 : vector<8x128xf32>
    %cst_66 = arith.constant 1.000000e+00 : f32
    %216 = vector.broadcast %cst_66 : f32 to vector<8x128xf32>
    %217 = arith.subf %216, %209 : vector<8x128xf32>
    %218 = arith.mulf %217, %215 : vector<8x128xf32>
    %219 = arith.mulf %209, %193 : vector<8x128xf32>
    %220 = arith.addf %218, %219 : vector<8x128xf32>
    %c7_67 = arith.constant 7 : index
    %c0_68 = arith.constant 0 : index
    %c0_69 = arith.constant 0 : index
    %221 = vector.load %arg5[%c7_67, %c0_68, %c0_69] : memref<8x8x128xf32, #tpu.memory_space<vmem>>, vector<1x8x128xf32>
    %222 = vector.shape_cast %221 : vector<1x8x128xf32> to vector<8x128xf32>
    %223 = vector.shape_cast %220 : vector<8x128xf32> to vector<1x8x128xf32>
    tpu.vector_store %arg5[%c7_67, %c0_68, %c0_69], %223 {strides = array<i32>} : memref<8x8x128xf32, #tpu.memory_space<vmem>>, vector<1x8x128xf32>,
    %c0_70 = arith.constant 0 : index
    %c0_71 = arith.constant 0 : index
    %224 = vector.load %arg6[%c0_70, %c0_71] : memref<8x128xf32, #tpu.memory_space<vmem>>, vector<8x128xf32>
    tpu.vector_store %arg6[%c0_70, %c0_71], %220 {strides = array<i32>} : memref<8x128xf32, #tpu.memory_space<vmem>>, vector<8x128xf32>,
    return
  }
  func.func @transform_0(%arg0: i32, %arg1: i32) -> (i32, i32, i32) {
    %c0_i32 = arith.constant 0 : i32
    %c0_i32_0 = arith.constant 0 : i32
    return %arg1, %arg0, %c0_i32 : i32, i32, i32
  }
  func.func @transform_1(%arg0: i32, %arg1: i32) -> (i32, i32) {
    %c0_i32 = arith.constant 0 : i32
    %c0_i32_0 = arith.constant 0 : i32
    %c0_i32_1 = arith.constant 0 : i32
    return %c0_i32, %c0_i32_0 : i32, i32
  }
  func.func @transform_2(%arg0: i32, %arg1: i32) -> (i32, i32) {
    %c0_i32 = arith.constant 0 : i32
    %c0_i32_0 = arith.constant 0 : i32
    %c0_i32_1 = arith.constant 0 : i32
    return %c0_i32, %c0_i32_0 : i32, i32
  }
  func.func @transform_3(%arg0: i32, %arg1: i32) -> (i32, i32, i32) {
    %c0_i32 = arith.constant 0 : i32
    %c0_i32_0 = arith.constant 0 : i32
    return %arg1, %arg0, %c0_i32 : i32, i32, i32
  }
}

</mosaic_0001>

<llo_original>
// kernel: tpu_custom_call.1
$region0: #{tpu_custom_call.1}
  #allocation0 [shape = 'u32[]', space=smem, size = 0x4, offset = 0x4, fixed_abs, tag = 'smem constant byte address 0x4 - core index']
  #allocation1 [shape = 'u32[144,128]{1,0:T(1,128)}', space=vmem, size = 0x12000, scoped, tag = 'internal scratch']
  %s0 = inlined_call_operand.hbm [shape: f32[8,128], index: 0, kind: input, shape index: {}]
  %s1 = inlined_call_operand.hbm [shape: f32[16,128], index: 1, kind: output, shape index: {}]
  %s2 = sld [smem:[#allocation0]]
  $region41: #{tpu_custom_call.1} parent=0
    _
  %s4 = ssub.s32 1, %s2
  %s5 = scalar_select 0, %s4, %s2
  $region1: #{tpu_custom_call.1} parent=0
    #allocation2 [shape = 'u8[4096]{0}', space=vmem, size = 0x1000, scoped, tag = 'input window, operand 0, single buffered']
    #allocation3 [shape = 's32[2]{0}', space=sflag, size = 0x8, scoped, tag = 'scoped memory for tpu_custom_call.1']
    #allocation4 [shape = 's32[2]{0}', space=sflag, size = 0x8, scoped, tag = 'scoped memory for tpu_custom_call.1']
    #allocation5 [shape = 'u8[8192]{0}', space=vmem, size = 0x2000, scoped, tag = 'output window, operand 0']
    %6 = vsyncpa [#allocation3], 0
    %7 = vsyncpa [#allocation4], 0
    %s8 = scalar_lea.sflag [#allocation4], 1
    %9 = vsyncpa %s8, 0
    loop: start=0, step=1, limit=4
    $region2: #{tpu_custom_call.1} parent=1 // loop_pre_header
      _
    $region3: #{tpu_custom_call.1} parent=1 // loop_header
      %s11 = sphi 0, %s15
      %p12 = scmp.ge.s32.totalorder %s11, 4
      %s19 = sphi 0, %s19
      %s21 = sphi 0, %s19
      %s22 = sphi 0, %s21
      %s36 = sphi 0, %s22
      %s42 = sphi 0, %s44
      %s45 = sphi 0, %s42
      %s46 = sphi 0, %s45
      %s62 = sphi 0, %s46
    $region4: #{tpu_custom_call.1} parent=1 // loop_header_branch
      %14 = sbr.rel (%p12) target = $region8
    $region5: #{tpu_custom_call.1} parent=1 // loop_body
      %s16 = ssub.s32 %s11, 1
      %s17 = ssub.s32 %s11, 2
      %s18 = sadd.s32 %s11, 1
      %s20 = sadd.s32 %s19, 1
      %p23 = scmp.eq.s32.totalorder %s11, 1
      %p24 = scmp.ne.s32.totalorder %s19, %s21
      %p25 = scmp.eq.s32.totalorder %s11, 0
      %p26 = por %p24, %p25
      %p27 = scmp.ne.s32.totalorder %s19, %s21
      %p28 = scmp.eq.s32.totalorder %s16, 1
      %p29 = por %p27, %p28
      %p30 = scmp.ne.s32.totalorder %s21, %s22
      %p31 = scmp.eq.s32.totalorder %s16, 0
      %p32 = por %p30, %p31
      %p33 = scmp.ne.s32.totalorder %s21, %s22
      %p34 = scmp.eq.s32.totalorder %s17, 1
      %p35 = por %p33, %p34
      %p37 = scmp.ne.s32.totalorder %s22, %s36
      %p38 = scmp.eq.s32.totalorder %s17, 0
      %p39 = por %p37, %p38
      %s40 = ssub.s32 %s11, %s18
      %p41 = scmp.eq.s32.totalorder %s40, 0
      %s43 = sadd.s32 %s42, 1
      %s44 = scalar_select %p41, %s42, %s43
      %p47 = pneg %p41
      %p48 = scmp.eq.s32.totalorder %s11, 1
      %p49 = por %p47, %p48
      %p50 = scmp.ne.s32.totalorder %s42, %s45
      %p51 = scmp.eq.s32.totalorder %s11, 0
      %p52 = por %p50, %p51
      %p53 = scmp.ne.s32.totalorder %s42, %s45
      %p54 = scmp.eq.s32.totalorder %s16, 1
      %p55 = por %p53, %p54
      %p56 = scmp.ne.s32.totalorder %s45, %s46
      %p57 = scmp.eq.s32.totalorder %s16, 0
      %p58 = por %p56, %p57
      %p59 = scmp.ne.s32.totalorder %s45, %s46
      %p60 = scmp.eq.s32.totalorder %s17, 1
      %p61 = por %p59, %p60
      %p63 = scmp.ne.s32.totalorder %s46, %s62
      %p64 = scmp.eq.s32.totalorder %s17, 0
      %p65 = por %p63, %p64
      %p66 = scmp.le.s32.totalorder 1, %s11
      %p67 = scmp.lt.s32.totalorder %s11, 3
      %p68 = pnand %p66, %p67
      %p69 = pneg %p68
      // Predicated region
      $region9: #{tpu_custom_call.1} parent=5 // pred_check
        _
      $region10: #{tpu_custom_call.1} parent=5 // pred_check_branch
        %71 = sbr.rel (%p68) target = $region12
      $region11: #{tpu_custom_call.1} parent=5 // pred_region
        %s72 = ssub.s32 %s11, 1
        // Predicated region
        $region13: #{tpu_custom_call.1} parent=11 // pred_check
          %p73 = pneg %p32
        $region14: #{tpu_custom_call.1} parent=11 // pred_check_branch
          %75 = sbr.rel (%p73) target = $region16
        $region15: #{tpu_custom_call.1} parent=11 // pred_region
          %s77 = ssub.s32 128, 128
          %78 = vsyncadd [#allocation3], %s77
          %s80 = sshll.u32 [#allocation2], 4
          %s81 = int_to_ptr.vmem [resolvable:$true] %s80
          %83 = dma.hbm_to_vmem [thread:$0]  %s0, 128, %s81, [#allocation3]
        $region16: #{tpu_custom_call.1} parent=11 // pred_fallthru
          _
      $region12: #{tpu_custom_call.1} parent=5 // pred_fallthru
        _
      %p84 = scmp.lt.s32.totalorder %s11, 2
      // Predicated region
      $region17: #{tpu_custom_call.1} parent=5 // pred_check
        %p85 = pneg %p84
      $region18: #{tpu_custom_call.1} parent=5 // pred_check_branch
        %87 = sbr.rel (%p85) target = $region20
      $region19: #{tpu_custom_call.1} parent=5 // pred_region
        _
      $region20: #{tpu_custom_call.1} parent=5 // pred_fallthru
        _
      %p88 = scmp.le.s32.totalorder 1, %s11
      %p89 = scmp.lt.s32.totalorder %s11, 3
      %p90 = pnand %p88, %p89
      %p91 = pneg %p90
      // Predicated region
      $region21: #{tpu_custom_call.1} parent=5 // pred_check
        _
      $region22: #{tpu_custom_call.1} parent=5 // pred_check_branch
        %93 = sbr.rel (%p90) target = $region24
      $region23: #{tpu_custom_call.1} parent=5 // pred_region
        %s94 = ssub.s32 %s11, 1
        // Predicated region
        $region25: #{tpu_custom_call.1} parent=23 // pred_check
          %p95 = pneg %p32
        $region26: #{tpu_custom_call.1} parent=23 // pred_check_branch
          %97 = sbr.rel (%p95) target = $region28
        $region27: #{tpu_custom_call.1} parent=23 // pred_region
          %98 = dma.done [#allocation3], 128
        $region28: #{tpu_custom_call.1} parent=23 // pred_fallthru
          _
        %p99 = pneg %p32
        %p100 = pneg %p29
        %p101 = pneg %p58
        %p102 = pneg %p55
        %s103 = sand.u32 %s45, 1
        %s104 = scalar_lea.sflag [#allocation4], %s103
        %s105 = sand.u32 %s45, 1
        %s106 = smul.addr %s105, 8
        %s107 = scalar_lea.vmem [#allocation5], %s106
        %v108 = vld [vmem:[#allocation2] sm:$0xff]
        %v109 = vmul.f32 %v108, 2.0
        %110 = vst [vmem:[%s107] sm:$0xff] %v109
        %s111 = sand.u32 %s45, 1
        %s112 = scalar_lea.sflag [#allocation4], %s111
        %s113 = sand.u32 %s45, 1
        %s114 = smul.addr %s113, 8
        %s115 = scalar_lea.vmem [#allocation5], %s114
        // Predicated region
        $region29: #{tpu_custom_call.1} parent=23 // pred_check
          %p116 = pneg %p55
        $region30: #{tpu_custom_call.1} parent=23 // pred_check_branch
          %118 = sbr.rel (%p116) target = $region32
        $region31: #{tpu_custom_call.1} parent=23 // pred_region
          %s120 = ssub.s32 128, 128
          %121 = vsyncadd %s112, %s120
          %s122 = smul.addr %s16, 128
          %s123 = scalar_lea.hbm %s1, %s122
          %s125 = sshll.u32 %s115, 4
          %s126 = int_to_ptr.vmem [resolvable:$true] %s125
          %128 = dma.vmem_to_hbm [thread:$0]  %s126, 128, %s123, %s112
        $region32: #{tpu_custom_call.1} parent=23 // pred_fallthru
          _
      $region24: #{tpu_custom_call.1} parent=5 // pred_fallthru
        _
      %p129 = scmp.le.s32.totalorder 2, %s11
      // Predicated region
      $region33: #{tpu_custom_call.1} parent=5 // pred_check
        %p130 = pneg %p129
      $region34: #{tpu_custom_call.1} parent=5 // pred_check_branch
        %132 = sbr.rel (%p130) target = $region36
      $region35: #{tpu_custom_call.1} parent=5 // pred_region
        %s133 = ssub.s32 %s11, 2
        // Predicated region
        $region37: #{tpu_custom_call.1} parent=35 // pred_check
          %p134 = pneg %p61
        $region38: #{tpu_custom_call.1} parent=35 // pred_check_branch
          %136 = sbr.rel (%p134) target = $region40
        $region39: #{tpu_custom_call.1} parent=35 // pred_region
          %s137 = sand.u32 %s46, 1
          %s138 = scalar_lea.sflag [#allocation4], %s137
          %s139 = sand.u32 %s46, 1
          %s140 = smul.addr %s139, 8
          %s141 = scalar_lea.vmem [#allocation5], %s140
          %142 = dma.done %s138, 128
        $region40: #{tpu_custom_call.1} parent=35 // pred_fallthru
          _
      $region36: #{tpu_custom_call.1} parent=5 // pred_fallthru
        _
    $region6: #{tpu_custom_call.1} parent=1 // loop_footer
      %s15 = sadd.s32 1, %s11
    $region7: #{tpu_custom_call.1} parent=1 // loop_footer_branch
      %10 = sbr.rel target = $region3
    $region8: #{tpu_custom_call.1} parent=1 // loop_exit
      _
    %143 = vsyncpa [#allocation3], 1
    %s144 = scalar_lea.sflag [#allocation3], 1
    %145 = vsyncpa %s144, 1
    %146 = vsyncpa [#allocation4], 1
    %s147 = scalar_lea.sflag [#allocation4], 1
    %148 = vsyncpa %s147, 1

// kernel: encoder_forward.1
$region0: #{encoder_forward.1}
  #allocation0 [shape = 'u32[]', space=smem, size = 0x4, offset = 0x4, fixed_abs, tag = 'smem constant byte address 0x4 - core index']
  #allocation1 [shape = 'u32[144,128]{1,0:T(1,128)}', space=vmem, size = 0x12000, scoped, tag = 'internal scratch']
  #allocation2 [shape = 'f32[8,128]{1,0:T(8,128)}', space=vmem, size = 0x1000, scoped, tag = 'scratch operand']
  %s0 = inlined_call_operand.vmem [shape: f32[8,8,384], index: 0, kind: input, shape index: {}]
  %s1 = inlined_call_operand.vmem [shape: f32[128,384], index: 1, kind: input, shape index: {}]
  %s2 = inlined_call_operand.vmem [shape: f32[1,128], index: 2, kind: input, shape index: {}]
  %s3 = inlined_call_operand.vmem [shape: f32[8,8,128], index: 3, kind: output, shape index: {}]
  %s4 = sld [smem:[#allocation0]]
  $region26: #{encoder_forward.1} parent=0
    _
  %s6 = ssub.s32 1, %s4
  %s7 = scalar_select 0, %s6, %s4
  // Predicated region
  $region2: #{encoder_forward.1} parent=0 // pred_check
    _
  $region3: #{encoder_forward.1} parent=0 // pred_check_branch
    %9 = sbr.rel (0) target = $region5
  $region4: #{encoder_forward.1} parent=0 // pred_region
    _
  $region5: #{encoder_forward.1} parent=0 // pred_fallthru
    _
  // Predicated region
  $region6: #{encoder_forward.1} parent=0 // pred_check
    _
  $region7: #{encoder_forward.1} parent=0 // pred_check_branch
    %11 = sbr.rel (0) target = $region9
  $region8: #{encoder_forward.1} parent=0 // pred_region
    _
  $region9: #{encoder_forward.1} parent=0 // pred_fallthru
    _
  // Predicated region
  $region10: #{encoder_forward.1} parent=0 // pred_check
    _
  $region11: #{encoder_forward.1} parent=0 // pred_check_branch
    %13 = sbr.rel (0) target = $region13
  $region12: #{encoder_forward.1} parent=0 // pred_region
    _
  $region13: #{encoder_forward.1} parent=0 // pred_fallthru
    _
  %p14 = scmp.eq.s32.totalorder 0, 0
  // Predicated region
  $region14: #{encoder_forward.1} parent=0 // pred_check
    %p15 = pneg %p14
  $region15: #{encoder_forward.1} parent=0 // pred_check_branch
    %17 = sbr.rel (%p15) target = $region17
  $region16: #{encoder_forward.1} parent=0 // pred_region
    %18 = vst [vmem:[#allocation2] sm:$0xff] 0.0
  $region17: #{encoder_forward.1} parent=0 // pred_fallthru
    _
  %v19 = vld [vmem:[%s1] sm:$0xff]
  %v20 = vld [vmem:[%s1 + $0x8] sm:$0xff]
  %v21 = vld [vmem:[%s1 + $0x10] sm:$0xff]
  %v22 = vld [vmem:[%s1 + $0x18] sm:$0xff]
  %v23 = vld [vmem:[%s1 + $0x20] sm:$0xff]
  %v24 = vld [vmem:[%s1 + $0x28] sm:$0xff]
  %v25 = vld [vmem:[%s1 + $0x30] sm:$0xff]
  %v26 = vld [vmem:[%s1 + $0x38] sm:$0xff]
  %v27 = vld [vmem:[%s1 + $0x40] sm:$0xff]
  %v28 = vld [vmem:[%s1 + $0x48] sm:$0xff]
  %v29 = vld [vmem:[%s1 + $0x50] sm:$0xff]
  %v30 = vld [vmem:[%s1 + $0x58] sm:$0xff]
  %v31 = vld [vmem:[%s1 + $0x60] sm:$0xff]
  %v32 = vld [vmem:[%s1 + $0x68] sm:$0xff]
  %v33 = vld [vmem:[%s1 + $0x70] sm:$0xff]
  %v34 = vld [vmem:[%s1 + $0x78] sm:$0xff]
  %v35 = vld [vmem:[%s1 + $0x80] sm:$0xff]
  %v36 = vld [vmem:[%s1 + $0x88] sm:$0xff]
  %v37 = vld [vmem:[%s1 + $0x90] sm:$0xff]
  %v38 = vld [vmem:[%s1 + $0x98] sm:$0xff]
  %v39 = vld [vmem:[%s1 + $0xa0] sm:$0xff]
  %v40 = vld [vmem:[%s1 + $0xa8] sm:$0xff]
  %v41 = vld [vmem:[%s1 + $0xb0] sm:$0xff]
  %v42 = vld [vmem:[%s1 + $0xb8] sm:$0xff]
  %v43 = vld [vmem:[%s1 + $0xc0] sm:$0xff]
  %v44 = vld [vmem:[%s1 + $0xc8] sm:$0xff]
  %v45 = vld [vmem:[%s1 + $0xd0] sm:$0xff]
  %v46 = vld [vmem:[%s1 + $0xd8] sm:$0xff]
  %v47 = vld [vmem:[%s1 + $0xe0] sm:$0xff]
  %v48 = vld [vmem:[%s1 + $0xe8] sm:$0xff]
  %v49 = vld [vmem:[%s1 + $0xf0] sm:$0xff]
  %v50 = vld [vmem:[%s1 + $0xf8] sm:$0xff]
  %v51 = vld [vmem:[%s1 + $0x100] sm:$0xff]
  %v52 = vld [vmem:[%s1 + $0x108] sm:$0xff]
  %v53 = vld [vmem:[%s1 + $0x110] sm:$0xff]
  %v54 = vld [vmem:[%s1 + $0x118] sm:$0xff]
  %v55 = vld [vmem:[%s1 + $0x120] sm:$0xff]
  %v56 = vld [vmem:[%s1 + $0x128] sm:$0xff]
  %v57 = vld [vmem:[%s1 + $0x130] sm:$0xff]
  %v58 = vld [vmem:[%s1 + $0x138] sm:$0xff]
  %v59 = vld [vmem:[%s1 + $0x140] sm:$0xff]
  %v60 = vld [vmem:[%s1 + $0x148] sm:$0xff]
  %v61 = vld [vmem:[%s1 + $0x150] sm:$0xff]
  %v62 = vld [vmem:[%s1 + $0x158] sm:$0xff]
  %v63 = vld [vmem:[%s1 + $0x160] sm:$0xff]
  %v64 = vld [vmem:[%s1 + $0x168] sm:$0xff]
  %v65 = vld [vmem:[%s1 + $0x170] sm:$0xff]
  %v66 = vld [vmem:[%s1 + $0x178] sm:$0xff]
  %v67 = vld [vmem:[%s2] sm:$0x1]
  %v69 = vlaneseq
  %v70 = vshrl.u32 %v69, 7
  %v71 = vsub.s32 0, %v70
  %v72 = vrot.slane %v67, %v71
  %v74 = vld [vmem:[#allocation2] sm:$0xff]
  %v75 = vld [vmem:[%s0] sm:$0xff]
  %v76 = vld [vmem:[%s0 + $0x8] sm:$0xff]
  %v77 = vld [vmem:[%s0 + $0x10] sm:$0xff]
  %78 = vmatprep.subr.mxu0 %v65
  %79 = vmatpush1.msra.mxu0 %v64
  %80 = vmatprep.subr.mxu0 %v62
  %81 = vmatpush1.msra.mxu0 %v61
  %82 = vmatprep.subr.mxu0 %v59
  %83 = vmatpush1.msra.mxu0 %v58
  %84 = vmatprep.subr.mxu0 %v56
  %85 = vmatpush1.msra.mxu0 %v55
  %86 = vmatprep.subr.mxu0 %v53
  %87 = vmatpush1.msra.mxu0 %v52
  %88 = vmatprep.subr.mxu0 %v50
  %89 = vmatpush1.msra.mxu0 %v49
  %90 = vmatprep.subr.mxu0 %v47
  %91 = vmatpush1.msra.mxu0 %v46
  %92 = vmatprep.subr.mxu0 %v44
  %93 = vmatpush1.msra.mxu0 %v43
  %94 = vmatprep.subr.mxu0 %v41
  %95 = vmatpush1.msra.mxu0 %v40
  %96 = vmatprep.subr.mxu0 %v38
  %97 = vmatpush1.msra.mxu0 %v37
  %98 = vmatprep.subr.mxu0 %v35
  %99 = vmatpush1.msra.mxu0 %v34
  %100 = vmatprep.subr.mxu0 %v32
  %101 = vmatpush1.msra.mxu0 %v31
  %102 = vmatprep.subr.mxu0 %v29
  %103 = vmatpush1.msra.mxu0 %v28
  %104 = vmatprep.subr.mxu0 %v26
  %105 = vmatpush1.msra.mxu0 %v25
  %106 = vmatprep.subr.mxu0 %v23
  %107 = vmatpush1.msra.mxu0 %v22
  %108 = vmatprep.subr.mxu0 %v20
  %109 = vmatpush1.msra.mxu0 %v19
  %110 = vmatprep.subr.mxu0 0.0
  %111 = vmatpush2.msra.mxu0 0.0
  %112 = vmatprep.subr.mxu0 0.0
  %113 = vmatpush2.msra.mxu0 0.0
  %114 = vmatprep.subr.mxu0 0.0
  %115 = vmatpush2.msra.mxu0 0.0
  %116 = vmatprep.subr.mxu0 0.0
  %117 = vmatpush2.msra.mxu0 0.0
  %118 = vmatprep.subr.mxu0 0.0
  %119 = vmatpush2.msra.mxu0 0.0
  %120 = vmatprep.subr.mxu0 0.0
  %121 = vmatpush2.msra.mxu0 0.0
  %122 = vmatprep.subr.mxu0 0.0
  %123 = vmatpush2.msra.mxu0 0.0
  %124 = vmatprep.subr.mxu0 0.0
  %125 = vmatpush2.msra.mxu0 0.0
  %126 = vmatprep.subr.mxu0 0.0
  %127 = vmatpush2.msra.mxu0 0.0
  %128 = vmatprep.subr.mxu0 0.0
  %129 = vmatpush2.msra.mxu0 0.0
  %130 = vmatprep.subr.mxu0 0.0
  %131 = vmatpush2.msra.mxu0 0.0
  %132 = vmatprep.subr.mxu0 0.0
  %133 = vmatpush2.msra.mxu0 0.0
  %134 = vmatprep.subr.mxu0 0.0
  %135 = vmatpush2.msra.mxu0 0.0
  %136 = vmatprep.subr.mxu0 0.0
  %137 = vmatpush2.msra.mxu0 0.0
  %138 = vmatprep.subr.mxu0 0.0
  %139 = vmatpush2.msra.mxu0 0.0
  %140 = vmatprep.subr.mxu0 0.0
  %141 = vmatpush2.msra.mxu0 0.0
  %142 = vmatprep.mubr.f32.mxu0 0.0
  %143 = vmatmul.mubr.f32.gmra.mxu0 %v74
  %v144 = vpop.f32.mrf.mxu0
  %v145 = vadd.f32 0.0, %v144
  %v146 = vpop.f32.mrf.mxu0
  %v147 = vadd.f32 0.0, %v146
  %148 = vdwg.mxu0
  %149 = vmatprep.subr.mxu0 0.0
  %150 = vmatpush1.msra.mxu0 %v66
  %151 = vmatprep.subr.mxu0 0.0
  %152 = vmatpush1.msra.mxu0 %v63
  %153 = vmatprep.subr.mxu0 0.0
  %154 = vmatpush1.msra.mxu0 %v60
  %155 = vmatprep.subr.mxu0 0.0
  %156 = vmatpush1.msra.mxu0 %v57
  %157 = vmatprep.subr.mxu0 0.0
  %158 = vmatpush1.msra.mxu0 %v54
  %159 = vmatprep.subr.mxu0 0.0
  %160 = vmatpush1.msra.mxu0 %v51
  %161 = vmatprep.subr.mxu0 0.0
  %162 = vmatpush1.msra.mxu0 %v48
  %163 = vmatprep.subr.mxu0 0.0
  %164 = vmatpush1.msra.mxu0 %v45
  %165 = vmatprep.subr.mxu0 0.0
  %166 = vmatpush1.msra.mxu0 %v42
  %167 = vmatprep.subr.mxu0 0.0
  %168 = vmatpush1.msra.mxu0 %v39
  %169 = vmatprep.subr.mxu0 0.0
  %170 = vmatpush1.msra.mxu0 %v36
  %171 = vmatprep.subr.mxu0 0.0
  %172 = vmatpush1.msra.mxu0 %v33
  %173 = vmatprep.subr.mxu0 0.0
  %174 = vmatpush1.msra.mxu0 %v30
  %175 = vmatprep.subr.mxu0 0.0
  %176 = vmatpush1.msra.mxu0 %v27
  %177 = vmatprep.subr.mxu0 0.0
  %178 = vmatpush1.msra.mxu0 %v24
  %179 = vmatprep.subr.mxu0 0.0
  %180 = vmatpush1.msra.mxu0 %v21
  %181 = vmatprep.subr.mxu0 0.0
  %182 = vmatpush2.msra.mxu0 0.0
  %183 = vmatprep.subr.mxu0 0.0
  %184 = vmatpush2.msra.mxu0 0.0
  %185 = vmatprep.subr.mxu0 0.0
  %186 = vmatpush2.msra.mxu0 0.0
  %187 = vmatprep.subr.mxu0 0.0
  %188 = vmatpush2.msra.mxu0 0.0
  %189 = vmatprep.subr.mxu0 0.0
  %190 = vmatpush2.msra.mxu0 0.0
  %191 = vmatprep.subr.mxu0 0.0
  %192 = vmatpush2.msra.mxu0 0.0
  %193 = vmatprep.subr.mxu0 0.0
  %194 = vmatpush2.msra.mxu0 0.0
  %195 = vmatprep.subr.mxu0 0.0
  %196 = vmatpush2.msra.mxu0 0.0
  %197 = vmatprep.subr.mxu0 0.0
  %198 = vmatpush2.msra.mxu0 0.0
  %199 = vmatprep.subr.mxu0 0.0
  %200 = vmatpush2.msra.mxu0 0.0
  %201 = vmatprep.subr.mxu0 0.0
  %202 = vmatpush2.msra.mxu0 0.0
  %203 = vmatprep.subr.mxu0 0.0
  %204 = vmatpush2.msra.mxu0 0.0
  %205 = vmatprep.subr.mxu0 0.0
  %206 = vmatpush2.msra.mxu0 0.0
  %207 = vmatprep.subr.mxu0 0.0
  %208 = vmatpush2.msra.mxu0 0.0
  %209 = vmatprep.subr.mxu0 0.0
  %210 = vmatpush2.msra.mxu0 0.0
  %211 = vmatprep.subr.mxu0 0.0
  %212 = vmatpush2.msra.mxu0 0.0
  %213 = vmatprep.mubr.f32.mxu0 0.0
  %214 = vmatmul.mubr.f32.gmra.mxu0 %v74
  %v215 = vpop.f32.mrf.mxu0
  %v216 = vadd.f32 0.0, %v215
  %v217 = vpop.f32.mrf.mxu0
  %218 = vdwg.mxu0
  %v219 = vadd.f32 %v75, %v145
  %v220 = vadd.f32 %v76, %v147
  %v221 = vxor.u32 %v219, 2147483648
  %v222 = vxor.u32 %v220, 2147483648
  %v223 = vmul.f32 %v221, 1.442695
  %v224 = vpow.pop %v223
  %v225 = vmul.f32 %v222, 1.442695
  %v226 = vpow.pop %v225
  %v227 = vadd.f32 %v224, 1.0
  %v228 = vadd.f32 %v226, 1.0
  %v229 = vrcp.pop %v227
  %v230 = vmul.f32 1.0, %v229
  %v231 = vrcp.pop %v228
  %v232 = vmul.f32 1.0, %v231
  %v233 = vadd.f32 %v216, %v72
  %v234 = vmul.f32 %v230, %v233
  %v235 = vadd.f32 %v77, %v234
  %v236 = vtanh.pop %v235
  %v237 = vsub.f32 1.0, %v232
  %v238 = vmul.f32 %v237, %v236
  %v239 = vmul.f32 %v232, %v74
  %v240 = vadd.f32 %v238, %v239
  %241 = vst [vmem:[%s3] sm:$0xff] %v240
  %s242 = scalar_lea.vmem %s0, 24
  %v243 = vld [vmem:[%s242] sm:$0xff]
  %v244 = vld [vmem:[%s242 + $0x8] sm:$0xff]
  %v245 = vld [vmem:[%s242 + $0x10] sm:$0xff]
  %246 = vmatprep.subr.mxu0 %v65
  %247 = vmatpush1.msra.mxu0 %v64
  %248 = vmatprep.subr.mxu0 %v62
  %249 = vmatpush1.msra.mxu0 %v61
  %250 = vmatprep.subr.mxu0 %v59
  %251 = vmatpush1.msra.mxu0 %v58
  %252 = vmatprep.subr.mxu0 %v56
  %253 = vmatpush1.msra.mxu0 %v55
  %254 = vmatprep.subr.mxu0 %v53
  %255 = vmatpush1.msra.mxu0 %v52
  %256 = vmatprep.subr.mxu0 %v50
  %257 = vmatpush1.msra.mxu0 %v49
  %258 = vmatprep.subr.mxu0 %v47
  %259 = vmatpush1.msra.mxu0 %v46
  %260 = vmatprep.subr.mxu0 %v44
  %261 = vmatpush1.msra.mxu0 %v43
  %262 = vmatprep.subr.mxu0 %v41
  %263 = vmatpush1.msra.mxu0 %v40
  %264 = vmatprep.subr.mxu0 %v38
  %265 = vmatpush1.msra.mxu0 %v37
  %266 = vmatprep.subr.mxu0 %v35
  %267 = vmatpush1.msra.mxu0 %v34
  %268 = vmatprep.subr.mxu0 %v32
  %269 = vmatpush1.msra.mxu0 %v31
  %270 = vmatprep.subr.mxu0 %v29
  %271 = vmatpush1.msra.mxu0 %v28
  %272 = vmatprep.subr.mxu0 %v26
  %273 = vmatpush1.msra.mxu0 %v25
  %274 = vmatprep.subr.mxu0 %v23
  %275 = vmatpush1.msra.mxu0 %v22
  %276 = vmatprep.subr.mxu0 %v20
  %277 = vmatpush1.msra.mxu0 %v19
  %278 = vmatprep.subr.mxu0 0.0
  %279 = vmatpush2.msra.mxu0 0.0
  %280 = vmatprep.subr.mxu0 0.0
  %281 = vmatpush2.msra.mxu0 0.0
  %282 = vmatprep.subr.mxu0 0.0
  %283 = vmatpush2.msra.mxu0 0.0
  %284 = vmatprep.subr.mxu0 0.0
  %285 = vmatpush2.msra.mxu0 0.0
  %286 = vmatprep.subr.mxu0 0.0
  %287 = vmatpush2.msra.mxu0 0.0
  %288 = vmatprep.subr.mxu0 0.0
  %289 = vmatpush2.msra.mxu0 0.0
  %290 = vmatprep.subr.mxu0 0.0
  %291 = vmatpush2.msra.mxu0 0.0
  %292 = vmatprep.subr.mxu0 0.0
  %293 = vmatpush2.msra.mxu0 0.0
  %294 = vmatprep.subr.mxu0 0.0
  %295 = vmatpush2.msra.mxu0 0.0
  %296 = vmatprep.subr.mxu0 0.0
  %297 = vmatpush2.msra.mxu0 0.0
  %298 = vmatprep.subr.mxu0 0.0
  %299 = vmatpush2.msra.mxu0 0.0
  %300 = vmatprep.subr.mxu0 0.0
  %301 = vmatpush2.msra.mxu0 0.0
  %302 = vmatprep.subr.mxu0 0.0
  %303 = vmatpush2.msra.mxu0 0.0
  %304 = vmatprep.subr.mxu0 0.0
  %305 = vmatpush2.msra.mxu0 0.0
  %306 = vmatprep.subr.mxu0 0.0
  %307 = vmatpush2.msra.mxu0 0.0
  %308 = vmatprep.subr.mxu0 0.0
  %309 = vmatpush2.msra.mxu0 0.0
  %310 = vmatprep.mubr.f32.mxu0 0.0
  %311 = vmatmul.mubr.f32.gmra.mxu0 %v240
  %v312 = vpop.f32.mrf.mxu0
  %v313 = vadd.f32 0.0, %v312
  %v314 = vpop.f32.mrf.mxu0
  %v315 = vadd.f32 0.0, %v314
  %316 = vdwg.mxu0
  %317 = vmatprep.subr.mxu0 0.0
  %318 = vmatpush1.msra.mxu0 %v66
  %319 = vmatprep.subr.mxu0 0.0
  %320 = vmatpush1.msra.mxu0 %v63
  %321 = vmatprep.subr.mxu0 0.0
  %322 = vmatpush1.msra.mxu0 %v60
  %323 = vmatprep.subr.mxu0 0.0
  %324 = vmatpush1.msra.mxu0 %v57
  %325 = vmatprep.subr.mxu0 0.0
  %326 = vmatpush1.msra.mxu0 %v54
  %327 = vmatprep.subr.mxu0 0.0
  %328 = vmatpush1.msra.mxu0 %v51
  %329 = vmatprep.subr.mxu0 0.0
  %330 = vmatpush1.msra.mxu0 %v48
  %331 = vmatprep.subr.mxu0 0.0
  %332 = vmatpush1.msra.mxu0 %v45
  %333 = vmatprep.subr.mxu0 0.0
  %334 = vmatpush1.msra.mxu0 %v42
  %335 = vmatprep.subr.mxu0 0.0
  %336 = vmatpush1.msra.mxu0 %v39
  %337 = vmatprep.subr.mxu0 0.0
  %338 = vmatpush1.msra.mxu0 %v36
  %339 = vmatprep.subr.mxu0 0.0
  %340 = vmatpush1.msra.mxu0 %v33
  %341 = vmatprep.subr.mxu0 0.0
  %342 = vmatpush1.msra.mxu0 %v30
  %343 = vmatprep.subr.mxu0 0.0
  %344 = vmatpush1.msra.mxu0 %v27
  %345 = vmatprep.subr.mxu0 0.0
  %346 = vmatpush1.msra.mxu0 %v24
  %347 = vmatprep.subr.mxu0 0.0
  %348 = vmatpush1.msra.mxu0 %v21
  %349 = vmatprep.subr.mxu0 0.0
  %350 = vmatpush2.msra.mxu0 0.0
  %351 = vmatprep.subr.mxu0 0.0
  %352 = vmatpush2.msra.mxu0 0.0
  %353 = vmatprep.subr.mxu0 0.0
  %354 = vmatpush2.msra.mxu0 0.0
  %355 = vmatprep.subr.mxu0 0.0
  %356 = vmatpush2.msra.mxu0 0.0
  %357 = vmatprep.subr.mxu0 0.0
  %358 = vmatpush2.msra.mxu0 0.0
  %359 = vmatprep.subr.mxu0 0.0
  %360 = vmatpush2.msra.mxu0 0.0
  %361 = vmatprep.subr.mxu0 0.0
  %362 = vmatpush2.msra.mxu0 0.0
  %363 = vmatprep.subr.mxu0 0.0
  %364 = vmatpush2.msra.mxu0 0.0
  %365 = vmatprep.subr.mxu0 0.0
  %366 = vmatpush2.msra.mxu0 0.0
  %367 = vmatprep.subr.mxu0 0.0
  %368 = vmatpush2.msra.mxu0 0.0
  %369 = vmatprep.subr.mxu0 0.0
  %370 = vmatpush2.msra.mxu0 0.0
  %371 = vmatprep.subr.mxu0 0.0
  %372 = vmatpush2.msra.mxu0 0.0
  %373 = vmatprep.subr.mxu0 0.0
  %374 = vmatpush2.msra.mxu0 0.0
  %375 = vmatprep.subr.mxu0 0.0
  %376 = vmatpush2.msra.mxu0 0.0
  %377 = vmatprep.subr.mxu0 0.0
  %378 = vmatpush2.msra.mxu0 0.0
  %379 = vmatprep.subr.mxu0 0.0
  %380 = vmatpush2.msra.mxu0 0.0
  %381 = vmatprep.mubr.f32.mxu0 0.0
  %382 = vmatmul.mubr.f32.gmra.mxu0 %v240
  %v383 = vpop.f32.mrf.mxu0
  %v384 = vadd.f32 0.0, %v383
  %v385 = vpop.f32.mrf.mxu0
  %386 = vdwg.mxu0
  %v387 = vadd.f32 %v243, %v313
  %v388 = vadd.f32 %v244, %v315
  %v389 = vxor.u32 %v387, 2147483648
  %v390 = vxor.u32 %v388, 2147483648
  %v391 = vmul.f32 %v389, 1.442695
  %v392 = vpow.pop %v391
  %v393 = vmul.f32 %v390, 1.442695
  %v394 = vpow.pop %v393
  %v395 = vadd.f32 %v392, 1.0
  %v396 = vadd.f32 %v394, 1.0
  %v397 = vrcp.pop %v395
  %v398 = vmul.f32 1.0, %v397
  %v399 = vrcp.pop %v396
  %v400 = vmul.f32 1.0, %v399
  %v401 = vadd.f32 %v384, %v72
  %v402 = vmul.f32 %v398, %v401
  %v403 = vadd.f32 %v245, %v402
  %v404 = vtanh.pop %v403
  %v405 = vsub.f32 1.0, %v400
  %v406 = vmul.f32 %v405, %v404
  %v407 = vmul.f32 %v400, %v240
  %v408 = vadd.f32 %v406, %v407
  %s409 = scalar_lea.vmem %s3, 8
  %410 = vst [vmem:[%s409] sm:$0xff] %v408
  %s411 = scalar_lea.vmem %s0, 48
  %v412 = vld [vmem:[%s411] sm:$0xff]
  %v413 = vld [vmem:[%s411 + $0x8] sm:$0xff]
  %v414 = vld [vmem:[%s411 + $0x10] sm:$0xff]
  %415 = vmatprep.subr.mxu0 %v65
  %416 = vmatpush1.msra.mxu0 %v64
  %417 = vmatprep.subr.mxu0 %v62
  %418 = vmatpush1.msra.mxu0 %v61
  %419 = vmatprep.subr.mxu0 %v59
  %420 = vmatpush1.msra.mxu0 %v58
  %421 = vmatprep.subr.mxu0 %v56
  %422 = vmatpush1.msra.mxu0 %v55
  %423 = vmatprep.subr.mxu0 %v53
  %424 = vmatpush1.msra.mxu0 %v52
  %425 = vmatprep.subr.mxu0 %v50
  %426 = vmatpush1.msra.mxu0 %v49
  %427 = vmatprep.subr.mxu0 %v47
  %428 = vmatpush1.msra.mxu0 %v46
  %429 = vmatprep.subr.mxu0 %v44
  %430 = vmatpush1.msra.mxu0 %v43
  %431 = vmatprep.subr.mxu0 %v41
  %432 = vmatpush1.msra.mxu0 %v40
  %433 = vmatprep.subr.mxu0 %v38
  %434 = vmatpush1.msra.mxu0 %v37
  %435 = vmatprep.subr.mxu0 %v35
  %436 = vmatpush1.msra.mxu0 %v34
  %437 = vmatprep.subr.mxu0 %v32
  %438 = vmatpush1.msra.mxu0 %v31
  %439 = vmatprep.subr.mxu0 %v29
  %440 = vmatpush1.msra.mxu0 %v28
  %441 = vmatprep.subr.mxu0 %v26
  %442 = vmatpush1.msra.mxu0 %v25
  %443 = vmatprep.subr.mxu0 %v23
  %444 = vmatpush1.msra.mxu0 %v22
  %445 = vmatprep.subr.mxu0 %v20
  %446 = vmatpush1.msra.mxu0 %v19
  %447 = vmatprep.subr.mxu0 0.0
  %448 = vmatpush2.msra.mxu0 0.0
  %449 = vmatprep.subr.mxu0 0.0
  %450 = vmatpush2.msra.mxu0 0.0
  %451 = vmatprep.subr.mxu0 0.0
  %452 = vmatpush2.msra.mxu0 0.0
  %453 = vmatprep.subr.mxu0 0.0
  %454 = vmatpush2.msra.mxu0 0.0
  %455 = vmatprep.subr.mxu0 0.0
  %456 = vmatpush2.msra.mxu0 0.0
  %457 = vmatprep.subr.mxu0 0.0
  %458 = vmatpush2.msra.mxu0 0.0
  %459 = vmatprep.subr.mxu0 0.0
  %460 = vmatpush2.msra.mxu0 0.0
  %461 = vmatprep.subr.mxu0 0.0
  %462 = vmatpush2.msra.mxu0 0.0
  %463 = vmatprep.subr.mxu0 0.0
  %464 = vmatpush2.msra.mxu0 0.0
  %465 = vmatprep.subr.mxu0 0.0
  %466 = vmatpush2.msra.mxu0 0.0
  %467 = vmatprep.subr.mxu0 0.0
  %468 = vmatpush2.msra.mxu0 0.0
  %469 = vmatprep.subr.mxu0 0.0
  %470 = vmatpush2.msra.mxu0 0.0
  %471 = vmatprep.subr.mxu0 0.0
  %472 = vmatpush2.msra.mxu0 0.0
  %473 = vmatprep.subr.mxu0 0.0
  %474 = vmatpush2.msra.mxu0 0.0
  %475 = vmatprep.subr.mxu0 0.0
  %476 = vmatpush2.msra.mxu0 0.0
  %477 = vmatprep.subr.mxu0 0.0
  %478 = vmatpush2.msra.mxu0 0.0
  %479 = vmatprep.mubr.f32.mxu0 0.0
  %480 = vmatmul.mubr.f32.gmra.mxu0 %v408
  %v481 = vpop.f32.mrf.mxu0
  %v482 = vadd.f32 0.0, %v481
  %v483 = vpop.f32.mrf.mxu0
  %v484 = vadd.f32 0.0, %v483
  %485 = vdwg.mxu0
  %486 = vmatprep.subr.mxu0 0.0
  %487 = vmatpush1.msra.mxu0 %v66
  %488 = vmatprep.subr.mxu0 0.0
  %489 = vmatpush1.msra.mxu0 %v63
  %490 = vmatprep.subr.mxu0 0.0
  %491 = vmatpush1.msra.mxu0 %v60
  %492 = vmatprep.subr.mxu0 0.0
  %493 = vmatpush1.msra.mxu0 %v57
  %494 = vmatprep.subr.mxu0 0.0
  %495 = vmatpush1.msra.mxu0 %v54
  %496 = vmatprep.subr.mxu0 0.0
  %497 = vmatpush1.msra.mxu0 %v51
  %498 = vmatprep.subr.mxu0 0.0
  %499 = vmatpush1.msra.mxu0 %v48
  %500 = vmatprep.subr.mxu0 0.0
  %501 = vmatpush1.msra.mxu0 %v45
  %502 = vmatprep.subr.mxu0 0.0
  %503 = vmatpush1.msra.mxu0 %v42
  %504 = vmatprep.subr.mxu0 0.0
  %505 = vmatpush1.msra.mxu0 %v39
  %506 = vmatprep.subr.mxu0 0.0
  %507 = vmatpush1.msra.mxu0 %v36
  %508 = vmatprep.subr.mxu0 0.0
  %509 = vmatpush1.msra.mxu0 %v33
  %510 = vmatprep.subr.mxu0 0.0
  %511 = vmatpush1.msra.mxu0 %v30
  %512 = vmatprep.subr.mxu0 0.0
  %513 = vmatpush1.msra.mxu0 %v27
  %514 = vmatprep.subr.mxu0 0.0
  %515 = vmatpush1.msra.mxu0 %v24
  %516 = vmatprep.subr.mxu0 0.0
  %517 = vmatpush1.msra.mxu0 %v21
  %518 = vmatprep.subr.mxu0 0.0
  %519 = vmatpush2.msra.mxu0 0.0
  %520 = vmatprep.subr.mxu0 0.0
  %521 = vmatpush2.msra.mxu0 0.0
  %522 = vmatprep.subr.mxu0 0.0
  %523 = vmatpush2.msra.mxu0 0.0
  %524 = vmatprep.subr.mxu0 0.0
  %525 = vmatpush2.msra.mxu0 0.0
  %526 = vmatprep.subr.mxu0 0.0
  %527 = vmatpush2.msra.mxu0 0.0
  %528 = vmatprep.subr.mxu0 0.0
  %529 = vmatpush2.msra.mxu0 0.0
  %530 = vmatprep.subr.mxu0 0.0
  %531 = vmatpush2.msra.mxu0 0.0
  %532 = vmatprep.subr.mxu0 0.0
  %533 = vmatpush2.msra.mxu0 0.0
  %534 = vmatprep.subr.mxu0 0.0
  %535 = vmatpush2.msra.mxu0 0.0
  %536 = vmatprep.subr.mxu0 0.0
  %537 = vmatpush2.msra.mxu0 0.0
  %538 = vmatprep.subr.mxu0 0.0
  %539 = vmatpush2.msra.mxu0 0.0
  %540 = vmatprep.subr.mxu0 0.0
  %541 = vmatpush2.msra.mxu0 0.0
  %542 = vmatprep.subr.mxu0 0.0
  %543 = vmatpush2.msra.mxu0 0.0
  %544 = vmatprep.subr.mxu0 0.0
  %545 = vmatpush2.msra.mxu0 0.0
  %546 = vmatprep.subr.mxu0 0.0
  %547 = vmatpush2.msra.mxu0 0.0
  %548 = vmatprep.subr.mxu0 0.0
  %549 = vmatpush2.msra.mxu0 0.0
  %550 = vmatprep.mubr.f32.mxu0 0.0
  %551 = vmatmul.mubr.f32.gmra.mxu0 %v408
  %v552 = vpop.f32.mrf.mxu0
  %v553 = vadd.f32 0.0, %v552
  %v554 = vpop.f32.mrf.mxu0
  %555 = vdwg.mxu0
  %v556 = vadd.f32 %v412, %v482
  %v557 = vadd.f32 %v413, %v484
  %v558 = vxor.u32 %v556, 2147483648
  %v559 = vxor.u32 %v557, 2147483648
  %v560 = vmul.f32 %v558, 1.442695
  %v561 = vpow.pop %v560
  %v562 = vmul.f32 %v559, 1.442695
  %v563 = vpow.pop %v562
  %v564 = vadd.f32 %v561, 1.0
  %v565 = vadd.f32 %v563, 1.0
  %v566 = vrcp.pop %v564
  %v567 = vmul.f32 1.0, %v566
  %v568 = vrcp.pop %v565
  %v569 = vmul.f32 1.0, %v568
  %v570 = vadd.f32 %v553, %v72
  %v571 = vmul.f32 %v567, %v570
  %v572 = vadd.f32 %v414, %v571
  %v573 = vtanh.pop %v572
  %v574 = vsub.f32 1.0, %v569
  %v575 = vmul.f32 %v574, %v573
  %v576 = vmul.f32 %v569, %v408
  %v577 = vadd.f32 %v575, %v576
  %s578 = scalar_lea.vmem %s3, 16
  %579 = vst [vmem:[%s578] sm:$0xff] %v577
  %s580 = scalar_lea.vmem %s0, 72
  %v581 = vld [vmem:[%s580] sm:$0xff]
  %v582 = vld [vmem:[%s580 + $0x8] sm:$0xff]
  %v583 = vld [vmem:[%s580 + $0x10] sm:$0xff]
  %584 = vmatprep.subr.mxu0 %v65
  %585 = vmatpush1.msra.mxu0 %v64
  %586 = vmatprep.subr.mxu0 %v62
  %587 = vmatpush1.msra.mxu0 %v61
  %588 = vmatprep.subr.mxu0 %v59
  %589 = vmatpush1.msra.mxu0 %v58
  %590 = vmatprep.subr.mxu0 %v56
  %591 = vmatpush1.msra.mxu0 %v55
  %592 = vmatprep.subr.mxu0 %v53
  %593 = vmatpush1.msra.mxu0 %v52
  %594 = vmatprep.subr.mxu0 %v50
  %595 = vmatpush1.msra.mxu0 %v49
  %596 = vmatprep.subr.mxu0 %v47
  %597 = vmatpush1.msra.mxu0 %v46
  %598 = vmatprep.subr.mxu0 %v44
  %599 = vmatpush1.msra.mxu0 %v43
  %600 = vmatprep.subr.mxu0 %v41
  %601 = vmatpush1.msra.mxu0 %v40
  %602 = vmatprep.subr.mxu0 %v38
  %603 = vmatpush1.msra.mxu0 %v37
  %604 = vmatprep.subr.mxu0 %v35
  %605 = vmatpush1.msra.mxu0 %v34
  %606 = vmatprep.subr.mxu0 %v32
  %607 = vmatpush1.msra.mxu0 %v31
  %608 = vmatprep.subr.mxu0 %v29
  %609 = vmatpush1.msra.mxu0 %v28
  %610 = vmatprep.subr.mxu0 %v26
  %611 = vmatpush1.msra.mxu0 %v25
  %612 = vmatprep.subr.mxu0 %v23
  %613 = vmatpush1.msra.mxu0 %v22
  %614 = vmatprep.subr.mxu0 %v20
  %615 = vmatpush1.msra.mxu0 %v19
  %616 = vmatprep.subr.mxu0 0.0
  %617 = vmatpush2.msra.mxu0 0.0
  %618 = vmatprep.subr.mxu0 0.0
  %619 = vmatpush2.msra.mxu0 0.0
  %620 = vmatprep.subr.mxu0 0.0
  %621 = vmatpush2.msra.mxu0 0.0
  %622 = vmatprep.subr.mxu0 0.0
  %623 = vmatpush2.msra.mxu0 0.0
  %624 = vmatprep.subr.mxu0 0.0
  %625 = vmatpush2.msra.mxu0 0.0
  %626 = vmatprep.subr.mxu0 0.0
  %627 = vmatpush2.msra.mxu0 0.0
  %628 = vmatprep.subr.mxu0 0.0
  %629 = vmatpush2.msra.mxu0 0.0
  %630 = vmatprep.subr.mxu0 0.0
  %631 = vmatpush2.msra.mxu0 0.0
  %632 = vmatprep.subr.mxu0 0.0
  %633 = vmatpush2.msra.mxu0 0.0
  %634 = vmatprep.subr.mxu0 0.0
  %635 = vmatpush2.msra.mxu0 0.0
  %636 = vmatprep.subr.mxu0 0.0
  %637 = vmatpush2.msra.mxu0 0.0
  %638 = vmatprep.subr.mxu0 0.0
  %639 = vmatpush2.msra.mxu0 0.0
  %640 = vmatprep.subr.mxu0 0.0
  %641 = vmatpush2.msra.mxu0 0.0
  %642 = vmatprep.subr.mxu0 0.0
  %643 = vmatpush2.msra.mxu0 0.0
  %644 = vmatprep.subr.mxu0 0.0
  %645 = vmatpush2.msra.mxu0 0.0
  %646 = vmatprep.subr.mxu0 0.0
  %647 = vmatpush2.msra.mxu0 0.0
  %648 = vmatprep.mubr.f32.mxu0 0.0
  %649 = vmatmul.mubr.f32.gmra.mxu0 %v577
  %v650 = vpop.f32.mrf.mxu0
  %v651 = vadd.f32 0.0, %v650
  %v652 = vpop.f32.mrf.mxu0
  %v653 = vadd.f32 0.0, %v652
  %654 = vdwg.mxu0
  %655 = vmatprep.subr.mxu0 0.0
  %656 = vmatpush1.msra.mxu0 %v66
  %657 = vmatprep.subr.mxu0 0.0
  %658 = vmatpush1.msra.mxu0 %v63
  %659 = vmatprep.subr.mxu0 0.0
  %660 = vmatpush1.msra.mxu0 %v60
  %661 = vmatprep.subr.mxu0 0.0
  %662 = vmatpush1.msra.mxu0 %v57
  %663 = vmatprep.subr.mxu0 0.0
  %664 = vmatpush1.msra.mxu0 %v54
  %665 = vmatprep.subr.mxu0 0.0
  %666 = vmatpush1.msra.mxu0 %v51
  %667 = vmatprep.subr.mxu0 0.0
  %668 = vmatpush1.msra.mxu0 %v48
  %669 = vmatprep.subr.mxu0 0.0
  %670 = vmatpush1.msra.mxu0 %v45
  %671 = vmatprep.subr.mxu0 0.0
  %672 = vmatpush1.msra.mxu0 %v42
  %673 = vmatprep.subr.mxu0 0.0
  %674 = vmatpush1.msra.mxu0 %v39
  %675 = vmatprep.subr.mxu0 0.0
  %676 = vmatpush1.msra.mxu0 %v36
  %677 = vmatprep.subr.mxu0 0.0
  %678 = vmatpush1.msra.mxu0 %v33
  %679 = vmatprep.subr.mxu0 0.0
  %680 = vmatpush1.msra.mxu0 %v30
  %681 = vmatprep.subr.mxu0 0.0
  %682 = vmatpush1.msra.mxu0 %v27
  %683 = vmatprep.subr.mxu0 0.0
  %684 = vmatpush1.msra.mxu0 %v24
  %685 = vmatprep.subr.mxu0 0.0
  %686 = vmatpush1.msra.mxu0 %v21
  %687 = vmatprep.subr.mxu0 0.0
  %688 = vmatpush2.msra.mxu0 0.0
  %689 = vmatprep.subr.mxu0 0.0
  %690 = vmatpush2.msra.mxu0 0.0
  %691 = vmatprep.subr.mxu0 0.0
  %692 = vmatpush2.msra.mxu0 0.0
  %693 = vmatprep.subr.mxu0 0.0
  %694 = vmatpush2.msra.mxu0 0.0
  %695 = vmatprep.subr.mxu0 0.0
  %696 = vmatpush2.msra.mxu0 0.0
  %697 = vmatprep.subr.mxu0 0.0
  %698 = vmatpush2.msra.mxu0 0.0
  %699 = vmatprep.subr.mxu0 0.0
  %700 = vmatpush2.msra.mxu0 0.0
  %701 = vmatprep.subr.mxu0 0.0
  %702 = vmatpush2.msra.mxu0 0.0
  %703 = vmatprep.subr.mxu0 0.0
  %704 = vmatpush2.msra.mxu0 0.0
  %705 = vmatprep.subr.mxu0 0.0
  %706 = vmatpush2.msra.mxu0 0.0
  %707 = vmatprep.subr.mxu0 0.0
  %708 = vmatpush2.msra.mxu0 0.0
  %709 = vmatprep.subr.mxu0 0.0
  %710 = vmatpush2.msra.mxu0 0.0
  %711 = vmatprep.subr.mxu0 0.0
  %712 = vmatpush2.msra.mxu0 0.0
  %713 = vmatprep.subr.mxu0 0.0
  %714 = vmatpush2.msra.mxu0 0.0
  %715 = vmatprep.subr.mxu0 0.0
  %716 = vmatpush2.msra.mxu0 0.0
  %717 = vmatprep.subr.mxu0 0.0
  %718 = vmatpush2.msra.mxu0 0.0
  %719 = vmatprep.mubr.f32.mxu0 0.0
  %720 = vmatmul.mubr.f32.gmra.mxu0 %v577
  %v721 = vpop.f32.mrf.mxu0
  %v722 = vadd.f32 0.0, %v721
  %v723 = vpop.f32.mrf.mxu0
  %724 = vdwg.mxu0
  %v725 = vadd.f32 %v581, %v651
  %v726 = vadd.f32 %v582, %v653
  %v727 = vxor.u32 %v725, 2147483648
  %v728 = vxor.u32 %v726, 2147483648
  %v729 = vmul.f32 %v727, 1.442695
  %v730 = vpow.pop %v729
  %v731 = vmul.f32 %v728, 1.442695
  %v732 = vpow.pop %v731
  %v733 = vadd.f32 %v730, 1.0
  %v734 = vadd.f32 %v732, 1.0
  %v735 = vrcp.pop %v733
  %v736 = vmul.f32 1.0, %v735
  %v737 = vrcp.pop %v734
  %v738 = vmul.f32 1.0, %v737
  %v739 = vadd.f32 %v722, %v72
  %v740 = vmul.f32 %v736, %v739
  %v741 = vadd.f32 %v583, %v740
  %v742 = vtanh.pop %v741
  %v743 = vsub.f32 1.0, %v738
  %v744 = vmul.f32 %v743, %v742
  %v745 = vmul.f32 %v738, %v577
  %v746 = vadd.f32 %v744, %v745
  %s747 = scalar_lea.vmem %s3, 24
  %748 = vst [vmem:[%s747] sm:$0xff] %v746
  %s749 = scalar_lea.vmem %s0, 96
  %v750 = vld [vmem:[%s749] sm:$0xff]
  %v751 = vld [vmem:[%s749 + $0x8] sm:$0xff]
  %v752 = vld [vmem:[%s749 + $0x10] sm:$0xff]
  %753 = vmatprep.subr.mxu0 %v65
  %754 = vmatpush1.msra.mxu0 %v64
  %755 = vmatprep.subr.mxu0 %v62
  %756 = vmatpush1.msra.mxu0 %v61
  %757 = vmatprep.subr.mxu0 %v59
  %758 = vmatpush1.msra.mxu0 %v58
  %759 = vmatprep.subr.mxu0 %v56
  %760 = vmatpush1.msra.mxu0 %v55
  %761 = vmatprep.subr.mxu0 %v53
  %762 = vmatpush1.msra.mxu0 %v52
  %763 = vmatprep.subr.mxu0 %v50
  %764 = vmatpush1.msra.mxu0 %v49
  %765 = vmatprep.subr.mxu0 %v47
  %766 = vmatpush1.msra.mxu0 %v46
  %767 = vmatprep.subr.mxu0 %v44
  %768 = vmatpush1.msra.mxu0 %v43
  %769 = vmatprep.subr.mxu0 %v41
  %770 = vmatpush1.msra.mxu0 %v40
  %771 = vmatprep.subr.mxu0 %v38
  %772 = vmatpush1.msra.mxu0 %v37
  %773 = vmatprep.subr.mxu0 %v35
  %774 = vmatpush1.msra.mxu0 %v34
  %775 = vmatprep.subr.mxu0 %v32
  %776 = vmatpush1.msra.mxu0 %v31
  %777 = vmatprep.subr.mxu0 %v29
  %778 = vmatpush1.msra.mxu0 %v28
  %779 = vmatprep.subr.mxu0 %v26
  %780 = vmatpush1.msra.mxu0 %v25
  %781 = vmatprep.subr.mxu0 %v23
  %782 = vmatpush1.msra.mxu0 %v22
  %783 = vmatprep.subr.mxu0 %v20
  %784 = vmatpush1.msra.mxu0 %v19
  %785 = vmatprep.subr.mxu0 0.0
  %786 = vmatpush2.msra.mxu0 0.0
  %787 = vmatprep.subr.mxu0 0.0
  %788 = vmatpush2.msra.mxu0 0.0
  %789 = vmatprep.subr.mxu0 0.0
  %790 = vmatpush2.msra.mxu0 0.0
  %791 = vmatprep.subr.mxu0 0.0
  %792 = vmatpush2.msra.mxu0 0.0
  %793 = vmatprep.subr.mxu0 0.0
  %794 = vmatpush2.msra.mxu0 0.0
  %795 = vmatprep.subr.mxu0 0.0
  %796 = vmatpush2.msra.mxu0 0.0
  %797 = vmatprep.subr.mxu0 0.0
  %798 = vmatpush2.msra.mxu0 0.0
  %799 = vmatprep.subr.mxu0 0.0
  %800 = vmatpush2.msra.mxu0 0.0
  %801 = vmatprep.subr.mxu0 0.0
  %802 = vmatpush2.msra.mxu0 0.0
  %803 = vmatprep.subr.mxu0 0.0
  %804 = vmatpush2.msra.mxu0 0.0
  %805 = vmatprep.subr.mxu0 0.0
  %806 = vmatpush2.msra.mxu0 0.0
  %807 = vmatprep.subr.mxu0 0.0
  %808 = vmatpush2.msra.mxu0 0.0
  %809 = vmatprep.subr.mxu0 0.0
  %810 = vmatpush2.msra.mxu0 0.0
  %811 = vmatprep.subr.mxu0 0.0
  %812 = vmatpush2.msra.mxu0 0.0
  %813 = vmatprep.subr.mxu0 0.0
  %814 = vmatpush2.msra.mxu0 0.0
  %815 = vmatprep.subr.mxu0 0.0
  %816 = vmatpush2.msra.mxu0 0.0
  %817 = vmatprep.mubr.f32.mxu0 0.0
  %818 = vmatmul.mubr.f32.gmra.mxu0 %v746
  %v819 = vpop.f32.mrf.mxu0
  %v820 = vadd.f32 0.0, %v819
  %v821 = vpop.f32.mrf.mxu0
  %v822 = vadd.f32 0.0, %v821
  %823 = vdwg.mxu0
  %824 = vmatprep.subr.mxu0 0.0
  %825 = vmatpush1.msra.mxu0 %v66
  %826 = vmatprep.subr.mxu0 0.0
  %827 = vmatpush1.msra.mxu0 %v63
  %828 = vmatprep.subr.mxu0 0.0
  %829 = vmatpush1.msra.mxu0 %v60
  %830 = vmatprep.subr.mxu0 0.0
  %831 = vmatpush1.msra.mxu0 %v57
  %832 = vmatprep.subr.mxu0 0.0
  %833 = vmatpush1.msra.mxu0 %v54
  %834 = vmatprep.subr.mxu0 0.0
  %835 = vmatpush1.msra.mxu0 %v51
  %836 = vmatprep.subr.mxu0 0.0
  %837 = vmatpush1.msra.mxu0 %v48
  %838 = vmatprep.subr.mxu0 0.0
  %839 = vmatpush1.msra.mxu0 %v45
  %840 = vmatprep.subr.mxu0 0.0
  %841 = vmatpush1.msra.mxu0 %v42
  %842 = vmatprep.subr.mxu0 0.0
  %843 = vmatpush1.msra.mxu0 %v39
  %844 = vmatprep.subr.mxu0 0.0
  %845 = vmatpush1.msra.mxu0 %v36
  %846 = vmatprep.subr.mxu0 0.0
  %847 = vmatpush1.msra.mxu0 %v33
  %848 = vmatprep.subr.mxu0 0.0
  %849 = vmatpush1.msra.mxu0 %v30
  %850 = vmatprep.subr.mxu0 0.0
  %851 = vmatpush1.msra.mxu0 %v27
  %852 = vmatprep.subr.mxu0 0.0
  %853 = vmatpush1.msra.mxu0 %v24
  %854 = vmatprep.subr.mxu0 0.0
  %855 = vmatpush1.msra.mxu0 %v21
  %856 = vmatprep.subr.mxu0 0.0
  %857 = vmatpush2.msra.mxu0 0.0
  %858 = vmatprep.subr.mxu0 0.0
  %859 = vmatpush2.msra.mxu0 0.0
  %860 = vmatprep.subr.mxu0 0.0
  %861 = vmatpush2.msra.mxu0 0.0
  %862 = vmatprep.subr.mxu0 0.0
  %863 = vmatpush2.msra.mxu0 0.0
  %864 = vmatprep.subr.mxu0 0.0
  %865 = vmatpush2.msra.mxu0 0.0
  %866 = vmatprep.subr.mxu0 0.0
  %867 = vmatpush2.msra.mxu0 0.0
  %868 = vmatprep.subr.mxu0 0.0
  %869 = vmatpush2.msra.mxu0 0.0
  %870 = vmatprep.subr.mxu0 0.0
  %871 = vmatpush2.msra.mxu0 0.0
  %872 = vmatprep.subr.mxu0 0.0
  %873 = vmatpush2.msra.mxu0 0.0
  %874 = vmatprep.subr.mxu0 0.0
  %875 = vmatpush2.msra.mxu0 0.0
  %876 = vmatprep.subr.mxu0 0.0
  %877 = vmatpush2.msra.mxu0 0.0
  %878 = vmatprep.subr.mxu0 0.0
  %879 = vmatpush2.msra.mxu0 0.0
  %880 = vmatprep.subr.mxu0 0.0
  %881 = vmatpush2.msra.mxu0 0.0
  %882 = vmatprep.subr.mxu0 0.0
  %883 = vmatpush2.msra.mxu0 0.0
  %884 = vmatprep.subr.mxu0 0.0
  %885 = vmatpush2.msra.mxu0 0.0
  %886 = vmatprep.subr.mxu0 0.0
  %887 = vmatpush2.msra.mxu0 0.0
  %888 = vmatprep.mubr.f32.mxu0 0.0
  %889 = vmatmul.mubr.f32.gmra.mxu0 %v746
  %v890 = vpop.f32.mrf.mxu0
  %v891 = vadd.f32 0.0, %v890
  %v892 = vpop.f32.mrf.mxu0
  %893 = vdwg.mxu0
  %v894 = vadd.f32 %v750, %v820
  %v895 = vadd.f32 %v751, %v822
  %v896 = vxor.u32 %v894, 2147483648
  %v897 = vxor.u32 %v895, 2147483648
  %v898 = vmul.f32 %v896, 1.442695
  %v899 = vpow.pop %v898
  %v900 = vmul.f32 %v897, 1.442695
  %v901 = vpow.pop %v900
  %v902 = vadd.f32 %v899, 1.0
  %v903 = vadd.f32 %v901, 1.0
  %v904 = vrcp.pop %v902
  %v905 = vmul.f32 1.0, %v904
  %v906 = vrcp.pop %v903
  %v907 = vmul.f32 1.0, %v906
  %v908 = vadd.f32 %v891, %v72
  %v909 = vmul.f32 %v905, %v908
  %v910 = vadd.f32 %v752, %v909
  %v911 = vtanh.pop %v910
  %v912 = vsub.f32 1.0, %v907
  %v913 = vmul.f32 %v912, %v911
  %v914 = vmul.f32 %v907, %v746
  %v915 = vadd.f32 %v913, %v914
  %s916 = scalar_lea.vmem %s3, 32
  %917 = vst [vmem:[%s916] sm:$0xff] %v915
  %s918 = scalar_lea.vmem %s0, 120
  %v919 = vld [vmem:[%s918] sm:$0xff]
  %v920 = vld [vmem:[%s918 + $0x8] sm:$0xff]
  %v921 = vld [vmem:[%s918 + $0x10] sm:$0xff]
  %922 = vmatprep.subr.mxu0 %v65
  %923 = vmatpush1.msra.mxu0 %v64
  %924 = vmatprep.subr.mxu0 %v62
  %925 = vmatpush1.msra.mxu0 %v61
  %926 = vmatprep.subr.mxu0 %v59
  %927 = vmatpush1.msra.mxu0 %v58
  %928 = vmatprep.subr.mxu0 %v56
  %929 = vmatpush1.msra.mxu0 %v55
  %930 = vmatprep.subr.mxu0 %v53
  %931 = vmatpush1.msra.mxu0 %v52
  %932 = vmatprep.subr.mxu0 %v50
  %933 = vmatpush1.msra.mxu0 %v49
  %934 = vmatprep.subr.mxu0 %v47
  %935 = vmatpush1.msra.mxu0 %v46
  %936 = vmatprep.subr.mxu0 %v44
  %937 = vmatpush1.msra.mxu0 %v43
  %938 = vmatprep.subr.mxu0 %v41
  %939 = vmatpush1.msra.mxu0 %v40
  %940 = vmatprep.subr.mxu0 %v38
  %941 = vmatpush1.msra.mxu0 %v37
  %942 = vmatprep.subr.mxu0 %v35
  %943 = vmatpush1.msra.mxu0 %v34
  %944 = vmatprep.subr.mxu0 %v32
  %945 = vmatpush1.msra.mxu0 %v31
  %946 = vmatprep.subr.mxu0 %v29
  %947 = vmatpush1.msra.mxu0 %v28
  %948 = vmatprep.subr.mxu0 %v26
  %949 = vmatpush1.msra.mxu0 %v25
  %950 = vmatprep.subr.mxu0 %v23
  %951 = vmatpush1.msra.mxu0 %v22
  %952 = vmatprep.subr.mxu0 %v20
  %953 = vmatpush1.msra.mxu0 %v19
  %954 = vmatprep.subr.mxu0 0.0
  %955 = vmatpush2.msra.mxu0 0.0
  %956 = vmatprep.subr.mxu0 0.0
  %957 = vmatpush2.msra.mxu0 0.0
  %958 = vmatprep.subr.mxu0 0.0
  %959 = vmatpush2.msra.mxu0 0.0
  %960 = vmatprep.subr.mxu0 0.0
  %961 = vmatpush2.msra.mxu0 0.0
  %962 = vmatprep.subr.mxu0 0.0
  %963 = vmatpush2.msra.mxu0 0.0
  %964 = vmatprep.subr.mxu0 0.0
  %965 = vmatpush2.msra.mxu0 0.0
  %966 = vmatprep.subr.mxu0 0.0
  %967 = vmatpush2.msra.mxu0 0.0
  %968 = vmatprep.subr.mxu0 0.0
  %969 = vmatpush2.msra.mxu0 0.0
  %970 = vmatprep.subr.mxu0 0.0
  %971 = vmatpush2.msra.mxu0 0.0
  %972 = vmatprep.subr.mxu0 0.0
  %973 = vmatpush2.msra.mxu0 0.0
  %974 = vmatprep.subr.mxu0 0.0
  %975 = vmatpush2.msra.mxu0 0.0
  %976 = vmatprep.subr.mxu0 0.0
  %977 = vmatpush2.msra.mxu0 0.0
  %978 = vmatprep.subr.mxu0 0.0
  %979 = vmatpush2.msra.mxu0 0.0
  %980 = vmatprep.subr.mxu0 0.0
  %981 = vmatpush2.msra.mxu0 0.0
  %982 = vmatprep.subr.mxu0 0.0
  %983 = vmatpush2.msra.mxu0 0.0
  %984 = vmatprep.subr.mxu0 0.0
  %985 = vmatpush2.msra.mxu0 0.0
  %986 = vmatprep.mubr.f32.mxu0 0.0
  %987 = vmatmul.mubr.f32.gmra.mxu0 %v915
  %v988 = vpop.f32.mrf.mxu0
  %v989 = vadd.f32 0.0, %v988
  %v990 = vpop.f32.mrf.mxu0
  %v991 = vadd.f32 0.0, %v990
  %992 = vdwg.mxu0
  %993 = vmatprep.subr.mxu0 0.0
  %994 = vmatpush1.msra.mxu0 %v66
  %995 = vmatprep.subr.mxu0 0.0
  %996 = vmatpush1.msra.mxu0 %v63
  %997 = vmatprep.subr.mxu0 0.0
  %998 = vmatpush1.msra.mxu0 %v60
  %999 = vmatprep.subr.mxu0 0.0
  %1000 = vmatpush1.msra.mxu0 %v57
  %1001 = vmatprep.subr.mxu0 0.0
  %1002 = vmatpush1.msra.mxu0 %v54
  %1003 = vmatprep.subr.mxu0 0.0
  %1004 = vmatpush1.msra.mxu0 %v51
  %1005 = vmatprep.subr.mxu0 0.0
  %1006 = vmatpush1.msra.mxu0 %v48
  %1007 = vmatprep.subr.mxu0 0.0
  %1008 = vmatpush1.msra.mxu0 %v45
  %1009 = vmatprep.subr.mxu0 0.0
  %1010 = vmatpush1.msra.mxu0 %v42
  %1011 = vmatprep.subr.mxu0 0.0
  %1012 = vmatpush1.msra.mxu0 %v39
  %1013 = vmatprep.subr.mxu0 0.0
  %1014 = vmatpush1.msra.mxu0 %v36
  %1015 = vmatprep.subr.mxu0 0.0
  %1016 = vmatpush1.msra.mxu0 %v33
  %1017 = vmatprep.subr.mxu0 0.0
  %1018 = vmatpush1.msra.mxu0 %v30
  %1019 = vmatprep.subr.mxu0 0.0
  %1020 = vmatpush1.msra.mxu0 %v27
  %1021 = vmatprep.subr.mxu0 0.0
  %1022 = vmatpush1.msra.mxu0 %v24
  %1023 = vmatprep.subr.mxu0 0.0
  %1024 = vmatpush1.msra.mxu0 %v21
  %1025 = vmatprep.subr.mxu0 0.0
  %1026 = vmatpush2.msra.mxu0 0.0
  %1027 = vmatprep.subr.mxu0 0.0
  %1028 = vmatpush2.msra.mxu0 0.0
  %1029 = vmatprep.subr.mxu0 0.0
  %1030 = vmatpush2.msra.mxu0 0.0
  %1031 = vmatprep.subr.mxu0 0.0
  %1032 = vmatpush2.msra.mxu0 0.0
  %1033 = vmatprep.subr.mxu0 0.0
  %1034 = vmatpush2.msra.mxu0 0.0
  %1035 = vmatprep.subr.mxu0 0.0
  %1036 = vmatpush2.msra.mxu0 0.0
  %1037 = vmatprep.subr.mxu0 0.0
  %1038 = vmatpush2.msra.mxu0 0.0
  %1039 = vmatprep.subr.mxu0 0.0
  %1040 = vmatpush2.msra.mxu0 0.0
  %1041 = vmatprep.subr.mxu0 0.0
  %1042 = vmatpush2.msra.mxu0 0.0
  %1043 = vmatprep.subr.mxu0 0.0
  %1044 = vmatpush2.msra.mxu0 0.0
  %1045 = vmatprep.subr.mxu0 0.0
  %1046 = vmatpush2.msra.mxu0 0.0
  %1047 = vmatprep.subr.mxu0 0.0
  %1048 = vmatpush2.msra.mxu0 0.0
  %1049 = vmatprep.subr.mxu0 0.0
  %1050 = vmatpush2.msra.mxu0 0.0
  %1051 = vmatprep.subr.mxu0 0.0
  %1052 = vmatpush2.msra.mxu0 0.0
  %1053 = vmatprep.subr.mxu0 0.0
  %1054 = vmatpush2.msra.mxu0 0.0
  %1055 = vmatprep.subr.mxu0 0.0
  %1056 = vmatpush2.msra.mxu0 0.0
  %1057 = vmatprep.mubr.f32.mxu0 0.0
  %1058 = vmatmul.mubr.f32.gmra.mxu0 %v915
  %v1059 = vpop.f32.mrf.mxu0
  %v1060 = vadd.f32 0.0, %v1059
  %v1061 = vpop.f32.mrf.mxu0
  %1062 = vdwg.mxu0
  %v1063 = vadd.f32 %v919, %v989
  %v1064 = vadd.f32 %v920, %v991
  %v1065 = vxor.u32 %v1063, 2147483648
  %v1066 = vxor.u32 %v1064, 2147483648
  %v1067 = vmul.f32 %v1065, 1.442695
  %v1068 = vpow.pop %v1067
  %v1069 = vmul.f32 %v1066, 1.442695
  %v1070 = vpow.pop %v1069
  %v1071 = vadd.f32 %v1068, 1.0
  %v1072 = vadd.f32 %v1070, 1.0
  %v1073 = vrcp.pop %v1071
  %v1074 = vmul.f32 1.0, %v1073
  %v1075 = vrcp.pop %v1072
  %v1076 = vmul.f32 1.0, %v1075
  %v1077 = vadd.f32 %v1060, %v72
  %v1078 = vmul.f32 %v1074, %v1077
  %v1079 = vadd.f32 %v921, %v1078
  %v1080 = vtanh.pop %v1079
  %v1081 = vsub.f32 1.0, %v1076
  %v1082 = vmul.f32 %v1081, %v1080
  %v1083 = vmul.f32 %v1076, %v915
  %v1084 = vadd.f32 %v1082, %v1083
  %s1085 = scalar_lea.vmem %s3, 40
  %1086 = vst [vmem:[%s1085] sm:$0xff] %v1084
  %s1087 = scalar_lea.vmem %s0, 144
  %v1088 = vld [vmem:[%s1087] sm:$0xff]
  %v1089 = vld [vmem:[%s1087 + $0x8] sm:$0xff]
  %v1090 = vld [vmem:[%s1087 + $0x10] sm:$0xff]
  %1091 = vmatprep.subr.mxu0 %v65
  %1092 = vmatpush1.msra.mxu0 %v64
  %1093 = vmatprep.subr.mxu0 %v62
  %1094 = vmatpush1.msra.mxu0 %v61
  %1095 = vmatprep.subr.mxu0 %v59
  %1096 = vmatpush1.msra.mxu0 %v58
  %1097 = vmatprep.subr.mxu0 %v56
  %1098 = vmatpush1.msra.mxu0 %v55
  %1099 = vmatprep.subr.mxu0 %v53
  %1100 = vmatpush1.msra.mxu0 %v52
  %1101 = vmatprep.subr.mxu0 %v50
  %1102 = vmatpush1.msra.mxu0 %v49
  %1103 = vmatprep.subr.mxu0 %v47
  %1104 = vmatpush1.msra.mxu0 %v46
  %1105 = vmatprep.subr.mxu0 %v44
  %1106 = vmatpush1.msra.mxu0 %v43
  %1107 = vmatprep.subr.mxu0 %v41
  %1108 = vmatpush1.msra.mxu0 %v40
  %1109 = vmatprep.subr.mxu0 %v38
  %1110 = vmatpush1.msra.mxu0 %v37
  %1111 = vmatprep.subr.mxu0 %v35
  %1112 = vmatpush1.msra.mxu0 %v34
  %1113 = vmatprep.subr.mxu0 %v32
  %1114 = vmatpush1.msra.mxu0 %v31
  %1115 = vmatprep.subr.mxu0 %v29
  %1116 = vmatpush1.msra.mxu0 %v28
  %1117 = vmatprep.subr.mxu0 %v26
  %1118 = vmatpush1.msra.mxu0 %v25
  %1119 = vmatprep.subr.mxu0 %v23
  %1120 = vmatpush1.msra.mxu0 %v22
  %1121 = vmatprep.subr.mxu0 %v20
  %1122 = vmatpush1.msra.mxu0 %v19
  %1123 = vmatprep.subr.mxu0 0.0
  %1124 = vmatpush2.msra.mxu0 0.0
  %1125 = vmatprep.subr.mxu0 0.0
  %1126 = vmatpush2.msra.mxu0 0.0
  %1127 = vmatprep.subr.mxu0 0.0
  %1128 = vmatpush2.msra.mxu0 0.0
  %1129 = vmatprep.subr.mxu0 0.0
  %1130 = vmatpush2.msra.mxu0 0.0
  %1131 = vmatprep.subr.mxu0 0.0
  %1132 = vmatpush2.msra.mxu0 0.0
  %1133 = vmatprep.subr.mxu0 0.0
  %1134 = vmatpush2.msra.mxu0 0.0
  %1135 = vmatprep.subr.mxu0 0.0
  %1136 = vmatpush2.msra.mxu0 0.0
  %1137 = vmatprep.subr.mxu0 0.0
  %1138 = vmatpush2.msra.mxu0 0.0
  %1139 = vmatprep.subr.mxu0 0.0
  %1140 = vmatpush2.msra.mxu0 0.0
  %1141 = vmatprep.subr.mxu0 0.0
  %1142 = vmatpush2.msra.mxu0 0.0
  %1143 = vmatprep.subr.mxu0 0.0
  %1144 = vmatpush2.msra.mxu0 0.0
  %1145 = vmatprep.subr.mxu0 0.0
  %1146 = vmatpush2.msra.mxu0 0.0
  %1147 = vmatprep.subr.mxu0 0.0
  %1148 = vmatpush2.msra.mxu0 0.0
  %1149 = vmatprep.subr.mxu0 0.0
  %1150 = vmatpush2.msra.mxu0 0.0
  %1151 = vmatprep.subr.mxu0 0.0
  %1152 = vmatpush2.msra.mxu0 0.0
  %1153 = vmatprep.subr.mxu0 0.0
  %1154 = vmatpush2.msra.mxu0 0.0
  %1155 = vmatprep.mubr.f32.mxu0 0.0
  %1156 = vmatmul.mubr.f32.gmra.mxu0 %v1084
  %v1157 = vpop.f32.mrf.mxu0
  %v1158 = vadd.f32 0.0, %v1157
  %v1159 = vpop.f32.mrf.mxu0
  %v1160 = vadd.f32 0.0, %v1159
  %1161 = vdwg.mxu0
  %1162 = vmatprep.subr.mxu0 0.0
  %1163 = vmatpush1.msra.mxu0 %v66
  %1164 = vmatprep.subr.mxu0 0.0
  %1165 = vmatpush1.msra.mxu0 %v63
  %1166 = vmatprep.subr.mxu0 0.0
  %1167 = vmatpush1.msra.mxu0 %v60
  %1168 = vmatprep.subr.mxu0 0.0
  %1169 = vmatpush1.msra.mxu0 %v57
  %1170 = vmatprep.subr.mxu0 0.0
  %1171 = vmatpush1.msra.mxu0 %v54
  %1172 = vmatprep.subr.mxu0 0.0
  %1173 = vmatpush1.msra.mxu0 %v51
  %1174 = vmatprep.subr.mxu0 0.0
  %1175 = vmatpush1.msra.mxu0 %v48
  %1176 = vmatprep.subr.mxu0 0.0
  %1177 = vmatpush1.msra.mxu0 %v45
  %1178 = vmatprep.subr.mxu0 0.0
  %1179 = vmatpush1.msra.mxu0 %v42
  %1180 = vmatprep.subr.mxu0 0.0
  %1181 = vmatpush1.msra.mxu0 %v39
  %1182 = vmatprep.subr.mxu0 0.0
  %1183 = vmatpush1.msra.mxu0 %v36
  %1184 = vmatprep.subr.mxu0 0.0
  %1185 = vmatpush1.msra.mxu0 %v33
  %1186 = vmatprep.subr.mxu0 0.0
  %1187 = vmatpush1.msra.mxu0 %v30
  %1188 = vmatprep.subr.mxu0 0.0
  %1189 = vmatpush1.msra.mxu0 %v27
  %1190 = vmatprep.subr.mxu0 0.0
  %1191 = vmatpush1.msra.mxu0 %v24
  %1192 = vmatprep.subr.mxu0 0.0
  %1193 = vmatpush1.msra.mxu0 %v21
  %1194 = vmatprep.subr.mxu0 0.0
  %1195 = vmatpush2.msra.mxu0 0.0
  %1196 = vmatprep.subr.mxu0 0.0
  %1197 = vmatpush2.msra.mxu0 0.0
  %1198 = vmatprep.subr.mxu0 0.0
  %1199 = vmatpush2.msra.mxu0 0.0
  %1200 = vmatprep.subr.mxu0 0.0
  %1201 = vmatpush2.msra.mxu0 0.0
  %1202 = vmatprep.subr.mxu0 0.0
  %1203 = vmatpush2.msra.mxu0 0.0
  %1204 = vmatprep.subr.mxu0 0.0
  %1205 = vmatpush2.msra.mxu0 0.0
  %1206 = vmatprep.subr.mxu0 0.0
  %1207 = vmatpush2.msra.mxu0 0.0
  %1208 = vmatprep.subr.mxu0 0.0
  %1209 = vmatpush2.msra.mxu0 0.0
  %1210 = vmatprep.subr.mxu0 0.0
  %1211 = vmatpush2.msra.mxu0 0.0
  %1212 = vmatprep.subr.mxu0 0.0
  %1213 = vmatpush2.msra.mxu0 0.0
  %1214 = vmatprep.subr.mxu0 0.0
  %1215 = vmatpush2.msra.mxu0 0.0
  %1216 = vmatprep.subr.mxu0 0.0
  %1217 = vmatpush2.msra.mxu0 0.0
  %1218 = vmatprep.subr.mxu0 0.0
  %1219 = vmatpush2.msra.mxu0 0.0
  %1220 = vmatprep.subr.mxu0 0.0
  %1221 = vmatpush2.msra.mxu0 0.0
  %1222 = vmatprep.subr.mxu0 0.0
  %1223 = vmatpush2.msra.mxu0 0.0
  %1224 = vmatprep.subr.mxu0 0.0
  %1225 = vmatpush2.msra.mxu0 0.0
  %1226 = vmatprep.mubr.f32.mxu0 0.0
  %1227 = vmatmul.mubr.f32.gmra.mxu0 %v1084
  %v1228 = vpop.f32.mrf.mxu0
  %v1229 = vadd.f32 0.0, %v1228
  %v1230 = vpop.f32.mrf.mxu0
  %1231 = vdwg.mxu0
  %v1232 = vadd.f32 %v1088, %v1158
  %v1233 = vadd.f32 %v1089, %v1160
  %v1234 = vxor.u32 %v1232, 2147483648
  %v1235 = vxor.u32 %v1233, 2147483648
  %v1236 = vmul.f32 %v1234, 1.442695
  %v1237 = vpow.pop %v1236
  %v1238 = vmul.f32 %v1235, 1.442695
  %v1239 = vpow.pop %v1238
  %v1240 = vadd.f32 %v1237, 1.0
  %v1241 = vadd.f32 %v1239, 1.0
  %v1242 = vrcp.pop %v1240
  %v1243 = vmul.f32 1.0, %v1242
  %v1244 = vrcp.pop %v1241
  %v1245 = vmul.f32 1.0, %v1244
  %v1246 = vadd.f32 %v1229, %v72
  %v1247 = vmul.f32 %v1243, %v1246
  %v1248 = vadd.f32 %v1090, %v1247
  %v1249 = vtanh.pop %v1248
  %v1250 = vsub.f32 1.0, %v1245
  %v1251 = vmul.f32 %v1250, %v1249
  %v1252 = vmul.f32 %v1245, %v1084
  %v1253 = vadd.f32 %v1251, %v1252
  %s1254 = scalar_lea.vmem %s3, 48
  %1255 = vst [vmem:[%s1254] sm:$0xff] %v1253
  %s1256 = scalar_lea.vmem %s0, 168
  %v1257 = vld [vmem:[%s1256] sm:$0xff]
  %v1258 = vld [vmem:[%s1256 + $0x8] sm:$0xff]
  %v1259 = vld [vmem:[%s1256 + $0x10] sm:$0xff]
  %1260 = vmatprep.subr.mxu0 %v65
  %1261 = vmatpush1.msra.mxu0 %v64
  %1262 = vmatprep.subr.mxu0 %v62
  %1263 = vmatpush1.msra.mxu0 %v61
  %1264 = vmatprep.subr.mxu0 %v59
  %1265 = vmatpush1.msra.mxu0 %v58
  %1266 = vmatprep.subr.mxu0 %v56
  %1267 = vmatpush1.msra.mxu0 %v55
  %1268 = vmatprep.subr.mxu0 %v53
  %1269 = vmatpush1.msra.mxu0 %v52
  %1270 = vmatprep.subr.mxu0 %v50
  %1271 = vmatpush1.msra.mxu0 %v49
  %1272 = vmatprep.subr.mxu0 %v47
  %1273 = vmatpush1.msra.mxu0 %v46
  %1274 = vmatprep.subr.mxu0 %v44
  %1275 = vmatpush1.msra.mxu0 %v43
  %1276 = vmatprep.subr.mxu0 %v41
  %1277 = vmatpush1.msra.mxu0 %v40
  %1278 = vmatprep.subr.mxu0 %v38
  %1279 = vmatpush1.msra.mxu0 %v37
  %1280 = vmatprep.subr.mxu0 %v35
  %1281 = vmatpush1.msra.mxu0 %v34
  %1282 = vmatprep.subr.mxu0 %v32
  %1283 = vmatpush1.msra.mxu0 %v31
  %1284 = vmatprep.subr.mxu0 %v29
  %1285 = vmatpush1.msra.mxu0 %v28
  %1286 = vmatprep.subr.mxu0 %v26
  %1287 = vmatpush1.msra.mxu0 %v25
  %1288 = vmatprep.subr.mxu0 %v23
  %1289 = vmatpush1.msra.mxu0 %v22
  %1290 = vmatprep.subr.mxu0 %v20
  %1291 = vmatpush1.msra.mxu0 %v19
  %1292 = vmatprep.subr.mxu0 0.0
  %1293 = vmatpush2.msra.mxu0 0.0
  %1294 = vmatprep.subr.mxu0 0.0
  %1295 = vmatpush2.msra.mxu0 0.0
  %1296 = vmatprep.subr.mxu0 0.0
  %1297 = vmatpush2.msra.mxu0 0.0
  %1298 = vmatprep.subr.mxu0 0.0
  %1299 = vmatpush2.msra.mxu0 0.0
  %1300 = vmatprep.subr.mxu0 0.0
  %1301 = vmatpush2.msra.mxu0 0.0
  %1302 = vmatprep.subr.mxu0 0.0
  %1303 = vmatpush2.msra.mxu0 0.0
  %1304 = vmatprep.subr.mxu0 0.0
  %1305 = vmatpush2.msra.mxu0 0.0
  %1306 = vmatprep.subr.mxu0 0.0
  %1307 = vmatpush2.msra.mxu0 0.0
  %1308 = vmatprep.subr.mxu0 0.0
  %1309 = vmatpush2.msra.mxu0 0.0
  %1310 = vmatprep.subr.mxu0 0.0
  %1311 = vmatpush2.msra.mxu0 0.0
  %1312 = vmatprep.subr.mxu0 0.0
  %1313 = vmatpush2.msra.mxu0 0.0
  %1314 = vmatprep.subr.mxu0 0.0
  %1315 = vmatpush2.msra.mxu0 0.0
  %1316 = vmatprep.subr.mxu0 0.0
  %1317 = vmatpush2.msra.mxu0 0.0
  %1318 = vmatprep.subr.mxu0 0.0
  %1319 = vmatpush2.msra.mxu0 0.0
  %1320 = vmatprep.subr.mxu0 0.0
  %1321 = vmatpush2.msra.mxu0 0.0
  %1322 = vmatprep.subr.mxu0 0.0
  %1323 = vmatpush2.msra.mxu0 0.0
  %1324 = vmatprep.mubr.f32.mxu0 0.0
  %1325 = vmatmul.mubr.f32.gmra.mxu0 %v1253
  %v1326 = vpop.f32.mrf.mxu0
  %v1327 = vadd.f32 0.0, %v1326
  %v1328 = vpop.f32.mrf.mxu0
  %v1329 = vadd.f32 0.0, %v1328
  %1330 = vdwg.mxu0
  %1331 = vmatprep.subr.mxu0 0.0
  %1332 = vmatpush1.msra.mxu0 %v66
  %1333 = vmatprep.subr.mxu0 0.0
  %1334 = vmatpush1.msra.mxu0 %v63
  %1335 = vmatprep.subr.mxu0 0.0
  %1336 = vmatpush1.msra.mxu0 %v60
  %1337 = vmatprep.subr.mxu0 0.0
  %1338 = vmatpush1.msra.mxu0 %v57
  %1339 = vmatprep.subr.mxu0 0.0
  %1340 = vmatpush1.msra.mxu0 %v54
  %1341 = vmatprep.subr.mxu0 0.0
  %1342 = vmatpush1.msra.mxu0 %v51
  %1343 = vmatprep.subr.mxu0 0.0
  %1344 = vmatpush1.msra.mxu0 %v48
  %1345 = vmatprep.subr.mxu0 0.0
  %1346 = vmatpush1.msra.mxu0 %v45
  %1347 = vmatprep.subr.mxu0 0.0
  %1348 = vmatpush1.msra.mxu0 %v42
  %1349 = vmatprep.subr.mxu0 0.0
  %1350 = vmatpush1.msra.mxu0 %v39
  %1351 = vmatprep.subr.mxu0 0.0
  %1352 = vmatpush1.msra.mxu0 %v36
  %1353 = vmatprep.subr.mxu0 0.0
  %1354 = vmatpush1.msra.mxu0 %v33
  %1355 = vmatprep.subr.mxu0 0.0
  %1356 = vmatpush1.msra.mxu0 %v30
  %1357 = vmatprep.subr.mxu0 0.0
  %1358 = vmatpush1.msra.mxu0 %v27
  %1359 = vmatprep.subr.mxu0 0.0
  %1360 = vmatpush1.msra.mxu0 %v24
  %1361 = vmatprep.subr.mxu0 0.0
  %1362 = vmatpush1.msra.mxu0 %v21
  %1363 = vmatprep.subr.mxu0 0.0
  %1364 = vmatpush2.msra.mxu0 0.0
  %1365 = vmatprep.subr.mxu0 0.0
  %1366 = vmatpush2.msra.mxu0 0.0
  %1367 = vmatprep.subr.mxu0 0.0
  %1368 = vmatpush2.msra.mxu0 0.0
  %1369 = vmatprep.subr.mxu0 0.0
  %1370 = vmatpush2.msra.mxu0 0.0
  %1371 = vmatprep.subr.mxu0 0.0
  %1372 = vmatpush2.msra.mxu0 0.0
  %1373 = vmatprep.subr.mxu0 0.0
  %1374 = vmatpush2.msra.mxu0 0.0
  %1375 = vmatprep.subr.mxu0 0.0
  %1376 = vmatpush2.msra.mxu0 0.0
  %1377 = vmatprep.subr.mxu0 0.0
  %1378 = vmatpush2.msra.mxu0 0.0
  %1379 = vmatprep.subr.mxu0 0.0
  %1380 = vmatpush2.msra.mxu0 0.0
  %1381 = vmatprep.subr.mxu0 0.0
  %1382 = vmatpush2.msra.mxu0 0.0
  %1383 = vmatprep.subr.mxu0 0.0
  %1384 = vmatpush2.msra.mxu0 0.0
  %1385 = vmatprep.subr.mxu0 0.0
  %1386 = vmatpush2.msra.mxu0 0.0
  %1387 = vmatprep.subr.mxu0 0.0
  %1388 = vmatpush2.msra.mxu0 0.0
  %1389 = vmatprep.subr.mxu0 0.0
  %1390 = vmatpush2.msra.mxu0 0.0
  %1391 = vmatprep.subr.mxu0 0.0
  %1392 = vmatpush2.msra.mxu0 0.0
  %1393 = vmatprep.subr.mxu0 0.0
  %1394 = vmatpush2.msra.mxu0 0.0
  %1395 = vmatprep.mubr.f32.mxu0 0.0
  %1396 = vmatmul.mubr.f32.gmra.mxu0 %v1253
  %v1397 = vpop.f32.mrf.mxu0
  %v1398 = vadd.f32 0.0, %v1397
  %v1399 = vpop.f32.mrf.mxu0
  %1400 = vdwg.mxu0
  %v1401 = vadd.f32 %v1257, %v1327
  %v1402 = vadd.f32 %v1258, %v1329
  %v1403 = vxor.u32 %v1401, 2147483648
  %v1404 = vxor.u32 %v1402, 2147483648
  %v1405 = vmul.f32 %v1403, 1.442695
  %v1406 = vpow.pop %v1405
  %v1407 = vmul.f32 %v1404, 1.442695
  %v1408 = vpow.pop %v1407
  %v1409 = vadd.f32 %v1406, 1.0
  %v1410 = vadd.f32 %v1408, 1.0
  %v1411 = vrcp.pop %v1409
  %v1412 = vmul.f32 1.0, %v1411
  %v1413 = vrcp.pop %v1410
  %v1414 = vmul.f32 1.0, %v1413
  %v1415 = vadd.f32 %v1398, %v72
  %v1416 = vmul.f32 %v1412, %v1415
  %v1417 = vadd.f32 %v1259, %v1416
  %v1418 = vtanh.pop %v1417
  %v1419 = vsub.f32 1.0, %v1414
  %v1420 = vmul.f32 %v1419, %v1418
  %v1421 = vmul.f32 %v1414, %v1253
  %v1422 = vadd.f32 %v1420, %v1421
  %s1423 = scalar_lea.vmem %s3, 56
  %1424 = vst [vmem:[%s1423] sm:$0xff] %v1422
  %1425 = vst [vmem:[#allocation2] sm:$0xff] %v1422
  // Predicated region
  $region18: #{encoder_forward.1} parent=0 // pred_check
    _
  $region19: #{encoder_forward.1} parent=0 // pred_check_branch
    %1427 = sbr.rel (0) target = $region21
  $region20: #{encoder_forward.1} parent=0 // pred_region
    _
  $region21: #{encoder_forward.1} parent=0 // pred_fallthru
    _
  // Predicated region
  $region22: #{encoder_forward.1} parent=0 // pred_check
    _
  $region23: #{encoder_forward.1} parent=0 // pred_check_branch
    %1429 = sbr.rel (0) target = $region25
  $region24: #{encoder_forward.1} parent=0 // pred_region
    _
  $region25: #{encoder_forward.1} parent=0 // pred_fallthru
    _

</llo_original>
